<compile_context>
chip_gen: v7x
topology: tpu7x:2x2x1
jax: 0.10.0
libtpu: 0.0.40
codegen_flags: <defaults>
</compile_context>

<pallas_src>
import jax
import jax.numpy as jnp
from jax.experimental import pallas as pl
from jax.experimental.pallas import tpu as pltpu


def _round_up(x, m):
    return (x + m - 1) // m * m


def mlp_kernel(x_ref, w1_ref, b1_ref, w2_ref, b2_ref, w3_ref, b3_ref,
               o_ref, acc_ref):
    k = pl.program_id(0)

    @pl.when(k == 0)
    def _():
        acc_ref[...] = jnp.zeros_like(acc_ref)

    # fc1: stream the contraction over K tiles (bf16 inputs, fp32 accumulate).
    acc_ref[...] += jnp.dot(x_ref[...], w1_ref[...],
                            preferred_element_type=jnp.float32)

    @pl.when(k == pl.num_programs(0) - 1)
    def _():
        # fc1 bias + ReLU in fp32, cast back to bf16 for the next MXU pass.
        h1 = jnp.maximum(acc_ref[...] + b1_ref[...], 0.0).astype(jnp.bfloat16)
        # fc2 + ReLU
        h2 = jnp.dot(h1, w2_ref[...], preferred_element_type=jnp.float32)
        h2 = jnp.maximum(h2 + b2_ref[...], 0.0).astype(jnp.bfloat16)
        # out (no activation)
        o = jnp.dot(h2, w3_ref[...], preferred_element_type=jnp.float32)
        o_ref[...] = (o + b3_ref[...]).astype(o_ref.dtype)


def net_forward(x, params, *, tk=640):
    w1, b1, w2, b2, w3, b3 = params
    B, D = x.shape
    H1 = w1.shape[1]
    H2 = w2.shape[1]
    A = w3.shape[1]

    # Pad the fc1 contraction dim to a multiple of the K tile (tk is itself a
    # multiple of 128) -> clean (8,128)-aligned tiles, tk divides K exactly.
    k_pad = _round_up(D, tk)
    if k_pad != D:
        x = jnp.pad(x, ((0, 0), (0, k_pad - D)))
        w1 = jnp.pad(w1, ((0, k_pad - D), (0, 0)))
    nk = k_pad // tk

    # bf16 weights / activations (accumulation stays fp32 inside the kernel).
    x = x.astype(jnp.bfloat16)
    w1 = w1.astype(jnp.bfloat16)
    w2 = w2.astype(jnp.bfloat16)
    w3 = w3.astype(jnp.bfloat16)
    b1 = b1.astype(jnp.float32)
    b2 = b2.astype(jnp.float32)
    b3 = b3.astype(jnp.float32)

    return pl.pallas_call(
        mlp_kernel,
        out_shape=jax.ShapeDtypeStruct((B, A), jnp.float32),
        grid_spec=pltpu.PrefetchScalarGridSpec(
            num_scalar_prefetch=0,
            grid=(nk,),
            in_specs=[
                pl.BlockSpec((B, tk), lambda k: (0, k)),    # x K-tiles (streamed)
                pl.BlockSpec((tk, H1), lambda k: (k, 0)),   # W1 K-tiles (streamed)
                pl.BlockSpec((1, H1), lambda k: (0, 0)),    # b1 (resident)
                pl.BlockSpec((H1, H2), lambda k: (0, 0)),   # W2 (resident)
                pl.BlockSpec((1, H2), lambda k: (0, 0)),    # b2 (resident)
                pl.BlockSpec((H2, A), lambda k: (0, 0)),    # W3 (resident)
                pl.BlockSpec((1, A), lambda k: (0, 0)),     # b3 (resident)
            ],
            out_specs=pl.BlockSpec((B, A), lambda k: (0, 0)),
            scratch_shapes=[pltpu.VMEM((B, H1), jnp.float32)],
        ),
        compiler_params=pltpu.CompilerParams(
            dimension_semantics=("arbitrary",),
        ),
    )(x, w1, b1, w2, b2, w3, b3)


def init_params(key, d_in, h1, h2, n_actions):
    """Deterministic init mimicking PyTorch's default Linear init (U[-1/sqrt(fan_in), +])."""
    ks = jax.random.split(key, 6)

    def lin(kw, kb, fan_in, fan_out):
        bound = 1.0 / jnp.sqrt(jnp.float32(fan_in))
        w = jax.random.uniform(kw, (fan_in, fan_out), jnp.float32, -bound, bound)
        b = jax.random.uniform(kb, (1, fan_out), jnp.float32, -bound, bound)
        return w, b

    w1, b1 = lin(ks[0], ks[1], d_in, h1)
    w2, b2 = lin(ks[2], ks[3], h1, h2)
    w3, b3 = lin(ks[4], ks[5], h2, n_actions)
    return (w1, b1, w2, b2, w3, b3)


def reference_forward(x, params):
    """Pure-JAX reference in the SAME precision scheme as the kernel
    (bf16 operands, fp32 accumulation, bf16 activations between layers)."""
    w1, b1, w2, b2, w3, b3 = params
    xb = x.astype(jnp.bfloat16)
    w1b = w1.astype(jnp.bfloat16)
    w2b = w2.astype(jnp.bfloat16)
    w3b = w3.astype(jnp.bfloat16)
    h1 = jnp.dot(xb, w1b, preferred_element_type=jnp.float32)
    h1 = jnp.maximum(h1 + b1, 0.0).astype(jnp.bfloat16)
    h2 = jnp.dot(h1, w2b, preferred_element_type=jnp.float32)
    h2 = jnp.maximum(h2 + b2, 0.0).astype(jnp.bfloat16)
    return jnp.dot(h2, w3b, preferred_element_type=jnp.float32) + b3


if __name__ == "__main__":
    # Flattened conv features -> 512 -> 256 -> actions (sizes implied by the module).
    B, D_IN, H1, H2, N_ACTIONS = 4, 3136, 512, 256, 8

    key = jax.random.PRNGKey(0)
    kx, kp = jax.random.split(key)
    x = jax.random.normal(kx, (B, D_IN), dtype=jnp.float32)
    params = init_params(kp, D_IN, H1, H2, N_ACTIONS)

    out = net_forward(x, params)
    out = jax.block_until_ready(out)

    ref = reference_forward(x, params)
    assert out.shape == (B, N_ACTIONS)
    # bf16 operands -> loosened tolerance vs the fp32-only version.
    assert jnp.allclose(out, ref, atol=1e-2, rtol=1e-2), "mismatch vs JAX reference"

    print("KERNEL_OK")
</pallas_src>

<mosaic_0001>
module attributes {stable_mosaic.version = 11 : i64} {
  func.func @mlp_kernel(%arg0: i32, %arg1: memref<4x640xbf16, #tpu.memory_space<vmem>>, %arg2: memref<640x512xbf16, #tpu.memory_space<vmem>>, %arg3: memref<1x512xf32, #tpu.memory_space<vmem>>, %arg4: memref<512x256xbf16, #tpu.memory_space<vmem>>, %arg5: memref<1x256xf32, #tpu.memory_space<vmem>>, %arg6: memref<256x8xbf16, #tpu.memory_space<vmem>>, %arg7: memref<1x8xf32, #tpu.memory_space<vmem>>, %arg8: memref<4x8xf32, #tpu.memory_space<vmem>>, %arg9: memref<4x512xf32, #tpu.memory_space<vmem>>) attributes {dimension_semantics = [#tpu.dimension_semantics<arbitrary>], iteration_bounds = array<i64: 5>, scalar_prefetch = 0 : i64, scratch_operands = 1 : i64, tpu.core_type = #tpu.core_type<tc>, window_params = [{transform_indices = @transform_0, window_bounds = array<i64: 4, 640>}, {transform_indices = @transform_1, window_bounds = array<i64: 640, 512>}, {pipeline_mode = #tpu.pipeline_mode<synchronous>, transform_indices = @transform_2, window_bounds = array<i64: 1, 512>}, {pipeline_mode = #tpu.pipeline_mode<synchronous>, transform_indices = @transform_3, window_bounds = array<i64: 512, 256>}, {pipeline_mode = #tpu.pipeline_mode<synchronous>, transform_indices = @transform_4, window_bounds = array<i64: 1, 256>}, {pipeline_mode = #tpu.pipeline_mode<synchronous>, transform_indices = @transform_5, window_bounds = array<i64: 256, 8>}, {pipeline_mode = #tpu.pipeline_mode<synchronous>, transform_indices = @transform_6, window_bounds = array<i64: 1, 8>}, {pipeline_mode = #tpu.pipeline_mode<synchronous>, transform_indices = @transform_7, window_bounds = array<i64: 4, 8>}]} {
    %c0_i32 = arith.constant 0 : i32
    %0 = arith.cmpi eq, %arg0, %c0_i32 : i32
    %1 = arith.extui %0 : i1 to i32
    %c0_i32_0 = arith.constant 0 : i32
    %2 = arith.cmpi ne, %1, %c0_i32_0 : i32
    scf.if %2 {
      %cst_9 = arith.constant 0.000000e+00 : f32
      %12 = vector.broadcast %cst_9 : f32 to vector<4x512xf32>
      %c0_10 = arith.constant 0 : index
      %c0_11 = arith.constant 0 : index
      %13 = vector.load %arg9[%c0_10, %c0_11] : memref<4x512xf32, #tpu.memory_space<vmem>>, vector<4x512xf32>
      tpu.vector_store %arg9[%c0_10, %c0_11], %12 {strides = array<i32>} : memref<4x512xf32, #tpu.memory_space<vmem>>, vector<4x512xf32>,
    } else {
    }
    %c0 = arith.constant 0 : index
    %c0_1 = arith.constant 0 : index
    %3 = vector.load %arg9[%c0, %c0_1] : memref<4x512xf32, #tpu.memory_space<vmem>>, vector<4x512xf32>
    %c0_2 = arith.constant 0 : index
    %c0_3 = arith.constant 0 : index
    %4 = vector.load %arg1[%c0_2, %c0_3] : memref<4x640xbf16, #tpu.memory_space<vmem>>, vector<4x640xbf16>
    %c0_4 = arith.constant 0 : index
    %c0_5 = arith.constant 0 : index
    %5 = vector.load %arg2[%c0_4, %c0_5] : memref<640x512xbf16, #tpu.memory_space<vmem>>, vector<640x512xbf16>
    %cst = arith.constant dense<0.000000e+00> : vector<4x512xf32>
    %6 = tpu.matmul %4, %5, %cst {dimension_numbers = #tpu.dot_dimension_numbers<[1], [0], [0], [1], [0, 0, 1, 1], [], []>} : vector<4x640xbf16>, vector<640x512xbf16>, vector<4x512xf32> -> vector<4x512xf32>
    %7 = arith.addf %3, %6 : vector<4x512xf32>
    %c0_6 = arith.constant 0 : index
    %c0_7 = arith.constant 0 : index
    %8 = vector.load %arg9[%c0_6, %c0_7] : memref<4x512xf32, #tpu.memory_space<vmem>>, vector<4x512xf32>
    tpu.vector_store %arg9[%c0_6, %c0_7], %7 {strides = array<i32>} : memref<4x512xf32, #tpu.memory_space<vmem>>, vector<4x512xf32>,
    %c4_i32 = arith.constant 4 : i32
    %9 = arith.cmpi eq, %arg0, %c4_i32 : i32
    %10 = arith.extui %9 : i1 to i32
    %c0_i32_8 = arith.constant 0 : i32
    %11 = arith.cmpi ne, %10, %c0_i32_8 : i32
    scf.if %11 {
      %c0_9 = arith.constant 0 : index
      %c0_10 = arith.constant 0 : index
      %12 = vector.load %arg9[%c0_9, %c0_10] : memref<4x512xf32, #tpu.memory_space<vmem>>, vector<4x512xf32>
      %c0_11 = arith.constant 0 : index
      %c0_12 = arith.constant 0 : index
      %13 = vector.load %arg3[%c0_11, %c0_12] : memref<1x512xf32, #tpu.memory_space<vmem>>, vector<1x512xf32>
      %14 = vector.broadcast %13 : vector<1x512xf32> to vector<4x512xf32>
      %15 = arith.addf %12, %14 : vector<4x512xf32>
      %cst_13 = arith.constant 0.000000e+00 : f32
      %16 = vector.broadcast %cst_13 : f32 to vector<4x512xf32>
      %17 = arith.maximumf %15, %16 : vector<4x512xf32>
      %18 = arith.truncf %17 : vector<4x512xf32> to vector<4x512xbf16>
      %c0_14 = arith.constant 0 : index
      %c0_15 = arith.constant 0 : index
      %19 = vector.load %arg4[%c0_14, %c0_15] : memref<512x256xbf16, #tpu.memory_space<vmem>>, vector<512x256xbf16>
      %cst_16 = arith.constant dense<0.000000e+00> : vector<4x256xf32>
      %20 = tpu.matmul %18, %19, %cst_16 {dimension_numbers = #tpu.dot_dimension_numbers<[1], [0], [0], [1], [0, 0, 1, 1], [], []>} : vector<4x512xbf16>, vector<512x256xbf16>, vector<4x256xf32> -> vector<4x256xf32>
      %c0_17 = arith.constant 0 : index
      %c0_18 = arith.constant 0 : index
      %21 = vector.load %arg5[%c0_17, %c0_18] : memref<1x256xf32, #tpu.memory_space<vmem>>, vector<1x256xf32>
      %22 = vector.broadcast %21 : vector<1x256xf32> to vector<4x256xf32>
      %23 = arith.addf %20, %22 : vector<4x256xf32>
      %cst_19 = arith.constant 0.000000e+00 : f32
      %24 = vector.broadcast %cst_19 : f32 to vector<4x256xf32>
      %25 = arith.maximumf %23, %24 : vector<4x256xf32>
      %26 = arith.truncf %25 : vector<4x256xf32> to vector<4x256xbf16>
      %c0_20 = arith.constant 0 : index
      %c0_21 = arith.constant 0 : index
      %27 = vector.load %arg6[%c0_20, %c0_21] : memref<256x8xbf16, #tpu.memory_space<vmem>>, vector<256x8xbf16>
      %cst_22 = arith.constant dense<0.000000e+00> : vector<4x8xf32>
      %28 = tpu.matmul %26, %27, %cst_22 {dimension_numbers = #tpu.dot_dimension_numbers<[1], [0], [0], [1], [0, 0, 1, 1], [], []>} : vector<4x256xbf16>, vector<256x8xbf16>, vector<4x8xf32> -> vector<4x8xf32>
      %c0_23 = arith.constant 0 : index
      %c0_24 = arith.constant 0 : index
      %29 = vector.load %arg7[%c0_23, %c0_24] : memref<1x8xf32, #tpu.memory_space<vmem>>, vector<1x8xf32>
      %30 = vector.broadcast %29 : vector<1x8xf32> to vector<4x8xf32>
      %31 = arith.addf %28, %30 : vector<4x8xf32>
      %c0_25 = arith.constant 0 : index
      %c0_26 = arith.constant 0 : index
      %32 = vector.load %arg8[%c0_25, %c0_26] : memref<4x8xf32, #tpu.memory_space<vmem>>, vector<4x8xf32>
      tpu.vector_store %arg8[%c0_25, %c0_26], %31 {strides = array<i32>} : memref<4x8xf32, #tpu.memory_space<vmem>>, vector<4x8xf32>,
    } else {
    }
    return
  }
  func.func @transform_0(%arg0: i32) -> (i32, i32) {
    %c0_i32 = arith.constant 0 : i32
    %c0_i32_0 = arith.constant 0 : i32
    return %c0_i32, %arg0 : i32, i32
  }
  func.func @transform_1(%arg0: i32) -> (i32, i32) {
    %c0_i32 = arith.constant 0 : i32
    %c0_i32_0 = arith.constant 0 : i32
    return %arg0, %c0_i32 : i32, i32
  }
  func.func @transform_2(%arg0: i32) -> (i32, i32) {
    %c0_i32 = arith.constant 0 : i32
    %c0_i32_0 = arith.constant 0 : i32
    %c0_i32_1 = arith.constant 0 : i32
    return %c0_i32, %c0_i32_0 : i32, i32
  }
  func.func @transform_3(%arg0: i32) -> (i32, i32) {
    %c0_i32 = arith.constant 0 : i32
    %c0_i32_0 = arith.constant 0 : i32
    %c0_i32_1 = arith.constant 0 : i32
    return %c0_i32, %c0_i32_0 : i32, i32
  }
  func.func @transform_4(%arg0: i32) -> (i32, i32) {
    %c0_i32 = arith.constant 0 : i32
    %c0_i32_0 = arith.constant 0 : i32
    %c0_i32_1 = arith.constant 0 : i32
    return %c0_i32, %c0_i32_0 : i32, i32
  }
  func.func @transform_5(%arg0: i32) -> (i32, i32) {
    %c0_i32 = arith.constant 0 : i32
    %c0_i32_0 = arith.constant 0 : i32
    %c0_i32_1 = arith.constant 0 : i32
    return %c0_i32, %c0_i32_0 : i32, i32
  }
  func.func @transform_6(%arg0: i32) -> (i32, i32) {
    %c0_i32 = arith.constant 0 : i32
    %c0_i32_0 = arith.constant 0 : i32
    %c0_i32_1 = arith.constant 0 : i32
    return %c0_i32, %c0_i32_0 : i32, i32
  }
  func.func @transform_7(%arg0: i32) -> (i32, i32) {
    %c0_i32 = arith.constant 0 : i32
    %c0_i32_0 = arith.constant 0 : i32
    %c0_i32_1 = arith.constant 0 : i32
    return %c0_i32, %c0_i32_0 : i32, i32
  }
}

</mosaic_0001>

<llo_original>
// kernel: tpu_custom_call.1
$region0: #{tpu_custom_call.1}
  #allocation0 [shape = 'u32[]', space=smem, size = 0x4, offset = 0x4, fixed_abs, tag = 'smem constant byte address 0x4 - core index']
  #allocation1 [shape = 'u32[144,128]{1,0:T(1,128)}', space=vmem, size = 0x12000, scoped, tag = 'internal scratch']
  #allocation2 [shape = 'f32[4,512]{1,0:T(4,128)}', space=vmem, size = 0x2000, scoped, tag = 'scratch operand']
  %s0 = inlined_call_operand.hbm [shape: bf16[4,3200], index: 0, kind: input, shape index: {}]
  %s1 = inlined_call_operand.hbm [shape: bf16[3200,512], index: 1, kind: input, shape index: {}]
  %s2 = inlined_call_operand.hbm [shape: f32[1,512], index: 2, kind: input, shape index: {}]
  %s3 = inlined_call_operand.hbm [shape: bf16[512,256], index: 3, kind: input, shape index: {}]
  %s4 = inlined_call_operand.hbm [shape: f32[1,256], index: 4, kind: input, shape index: {}]
  %s5 = inlined_call_operand.vmem [shape: bf16[256,8], index: 5, kind: input, shape index: {}]
  %s6 = inlined_call_operand.hbm [shape: f32[1,8], index: 6, kind: input, shape index: {}]
  %s7 = inlined_call_operand.hbm [shape: f32[4,8], index: 7, kind: output, shape index: {}]
  %s8 = sld [smem:[#allocation0]]
  $region93: #{tpu_custom_call.1} parent=0
    _
  %s10 = ssub.s32 1, %s8
  %s11 = scalar_select 0, %s10, %s8
  $region1: #{tpu_custom_call.1} parent=0
    #allocation3 [shape = 'u8[10240]{0}', space=vmem, size = 0x2800, scoped, tag = 'input window, operand 0']
    #allocation4 [shape = 's32[2]{0}', space=sflag, size = 0x8, scoped, tag = 'scoped memory for tpu_custom_call.1']
    #allocation5 [shape = 's32[2]{0}', space=sflag, size = 0x8, scoped, tag = 'scoped memory for tpu_custom_call.1']
    #allocation6 [shape = 'u8[1310720]{0}', space=vmem, size = 0x140000, scoped, tag = 'input window, operand 1']
    #allocation7 [shape = 's32[2]{0}', space=sflag, size = 0x8, scoped, tag = 'scoped memory for tpu_custom_call.1']
    #allocation8 [shape = 'u8[2048]{0}', space=vmem, size = 0x800, scoped, tag = 'input window, operand 2, single buffered']
    #allocation9 [shape = 'u8[262144]{0}', space=vmem, size = 0x40000, scoped, tag = 'input window, operand 3, single buffered']
    #allocation10 [shape = 's32[1]{0}', space=sflag, size = 0x4, scoped, tag = 'scoped memory for tpu_custom_call.1']
    #allocation11 [shape = 'u8[1024]{0}', space=vmem, size = 0x400, scoped, tag = 'input window, operand 4, single buffered']
    #allocation12 [shape = 'u8[512]{0}', space=vmem, size = 0x400, scoped, tag = 'input window, operand 6, single buffered']
    #allocation13 [shape = 's32[1]{0}', space=sflag, size = 0x4, scoped, tag = 'scoped memory for tpu_custom_call.1']
    #allocation14 [shape = 'u8[2048]{0}', space=vmem, size = 0x800, scoped, tag = 'output window, operand 0, single buffered']
    %12 = vsyncpa [#allocation4], 0
    %s13 = scalar_lea.sflag [#allocation4], 1
    %14 = vsyncpa %s13, 0
    %15 = vsyncpa [#allocation7], 0
    %s16 = scalar_lea.sflag [#allocation7], 1
    %17 = vsyncpa %s16, 0
    %18 = vsyncpa [#allocation10], 0
    %19 = vsyncpa [#allocation13], 0
    %20 = vsyncpa [#allocation5], 0
    loop: start=0, step=1, limit=7
    $region2: #{tpu_custom_call.1} parent=1 // loop_pre_header
      _
    $region3: #{tpu_custom_call.1} parent=1 // loop_header
      %s22 = sphi 0, %s26
      %p23 = scmp.ge.s32.totalorder %s22, 7
      %s32 = sphi 0, %s34
      %s35 = sphi 0, %s32
      %s36 = sphi 0, %s35
      %s52 = sphi 0, %s36
      %s58 = sphi 0, %s60
      %s61 = sphi 0, %s58
      %s62 = sphi 0, %s61
      %s78 = sphi 0, %s62
      %s82 = sphi 0, %s82
      %s84 = sphi 0, %s82
      %s85 = sphi 0, %s84
      %s99 = sphi 0, %s85
      %s103 = sphi 0, %s103
      %s105 = sphi 0, %s103
      %s106 = sphi 0, %s105
      %s120 = sphi 0, %s106
      %s124 = sphi 0, %s124
      %s126 = sphi 0, %s124
      %s127 = sphi 0, %s126
      %s141 = sphi 0, %s127
      %s145 = sphi 0, %s145
      %s147 = sphi 0, %s145
      %s148 = sphi 0, %s147
      %s162 = sphi 0, %s148
      %s166 = sphi 0, %s166
      %s168 = sphi 0, %s166
      %s169 = sphi 0, %s168
      %s183 = sphi 0, %s169
      %s187 = sphi 0, %s187
      %s189 = sphi 0, %s187
      %s190 = sphi 0, %s189
      %s204 = sphi 0, %s190
    $region4: #{tpu_custom_call.1} parent=1 // loop_header_branch
      %25 = sbr.rel (%p23) target = $region8
    $region5: #{tpu_custom_call.1} parent=1 // loop_body
      %s27 = ssub.s32 %s22, 1
      %s28 = ssub.s32 %s22, 2
      %s29 = sadd.s32 %s22, 1
      %s30 = ssub.s32 %s22, %s29
      %p31 = scmp.eq.s32.totalorder %s30, 0
      %s33 = sadd.s32 %s32, 1
      %s34 = scalar_select %p31, %s32, %s33
      %p37 = pneg %p31
      %p38 = scmp.eq.s32.totalorder %s22, 4
      %p39 = por %p37, %p38
      %p40 = scmp.ne.s32.totalorder %s32, %s35
      %p41 = scmp.eq.s32.totalorder %s22, 0
      %p42 = por %p40, %p41
      %p43 = scmp.ne.s32.totalorder %s32, %s35
      %p44 = scmp.eq.s32.totalorder %s27, 4
      %p45 = por %p43, %p44
      %p46 = scmp.ne.s32.totalorder %s35, %s36
      %p47 = scmp.eq.s32.totalorder %s27, 0
      %p48 = por %p46, %p47
      %p49 = scmp.ne.s32.totalorder %s35, %s36
      %p50 = scmp.eq.s32.totalorder %s28, 4
      %p51 = por %p49, %p50
      %p53 = scmp.ne.s32.totalorder %s36, %s52
      %p54 = scmp.eq.s32.totalorder %s28, 0
      %p55 = por %p53, %p54
      %s56 = ssub.s32 %s22, %s29
      %p57 = scmp.eq.s32.totalorder %s56, 0
      %s59 = sadd.s32 %s58, 1
      %s60 = scalar_select %p57, %s58, %s59
      %p63 = pneg %p57
      %p64 = scmp.eq.s32.totalorder %s22, 4
      %p65 = por %p63, %p64
      %p66 = scmp.ne.s32.totalorder %s58, %s61
      %p67 = scmp.eq.s32.totalorder %s22, 0
      %p68 = por %p66, %p67
      %p69 = scmp.ne.s32.totalorder %s58, %s61
      %p70 = scmp.eq.s32.totalorder %s27, 4
      %p71 = por %p69, %p70
      %p72 = scmp.ne.s32.totalorder %s61, %s62
      %p73 = scmp.eq.s32.totalorder %s27, 0
      %p74 = por %p72, %p73
      %p75 = scmp.ne.s32.totalorder %s61, %s62
      %p76 = scmp.eq.s32.totalorder %s28, 4
      %p77 = por %p75, %p76
      %p79 = scmp.ne.s32.totalorder %s62, %s78
      %p80 = scmp.eq.s32.totalorder %s28, 0
      %p81 = por %p79, %p80
      %s83 = sadd.s32 %s82, 1
      %p86 = scmp.eq.s32.totalorder %s22, 4
      %p87 = scmp.ne.s32.totalorder %s82, %s84
      %p88 = scmp.eq.s32.totalorder %s22, 0
      %p89 = por %p87, %p88
      %p90 = scmp.ne.s32.totalorder %s82, %s84
      %p91 = scmp.eq.s32.totalorder %s27, 4
      %p92 = por %p90, %p91
      %p93 = scmp.ne.s32.totalorder %s84, %s85
      %p94 = scmp.eq.s32.totalorder %s27, 0
      %p95 = por %p93, %p94
      %p96 = scmp.ne.s32.totalorder %s84, %s85
      %p97 = scmp.eq.s32.totalorder %s28, 4
      %p98 = por %p96, %p97
      %p100 = scmp.ne.s32.totalorder %s85, %s99
      %p101 = scmp.eq.s32.totalorder %s28, 0
      %p102 = por %p100, %p101
      %s104 = sadd.s32 %s103, 1
      %p107 = scmp.eq.s32.totalorder %s22, 4
      %p108 = scmp.ne.s32.totalorder %s103, %s105
      %p109 = scmp.eq.s32.totalorder %s22, 0
      %p110 = por %p108, %p109
      %p111 = scmp.ne.s32.totalorder %s103, %s105
      %p112 = scmp.eq.s32.totalorder %s27, 4
      %p113 = por %p111, %p112
      %p114 = scmp.ne.s32.totalorder %s105, %s106
      %p115 = scmp.eq.s32.totalorder %s27, 0
      %p116 = por %p114, %p115
      %p117 = scmp.ne.s32.totalorder %s105, %s106
      %p118 = scmp.eq.s32.totalorder %s28, 4
      %p119 = por %p117, %p118
      %p121 = scmp.ne.s32.totalorder %s106, %s120
      %p122 = scmp.eq.s32.totalorder %s28, 0
      %p123 = por %p121, %p122
      %s125 = sadd.s32 %s124, 1
      %p128 = scmp.eq.s32.totalorder %s22, 4
      %p129 = scmp.ne.s32.totalorder %s124, %s126
      %p130 = scmp.eq.s32.totalorder %s22, 0
      %p131 = por %p129, %p130
      %p132 = scmp.ne.s32.totalorder %s124, %s126
      %p133 = scmp.eq.s32.totalorder %s27, 4
      %p134 = por %p132, %p133
      %p135 = scmp.ne.s32.totalorder %s126, %s127
      %p136 = scmp.eq.s32.totalorder %s27, 0
      %p137 = por %p135, %p136
      %p138 = scmp.ne.s32.totalorder %s126, %s127
      %p139 = scmp.eq.s32.totalorder %s28, 4
      %p140 = por %p138, %p139
      %p142 = scmp.ne.s32.totalorder %s127, %s141
      %p143 = scmp.eq.s32.totalorder %s28, 0
      %p144 = por %p142, %p143
      %s146 = sadd.s32 %s145, 1
      %p149 = scmp.eq.s32.totalorder %s22, 4
      %p150 = scmp.ne.s32.totalorder %s145, %s147
      %p151 = scmp.eq.s32.totalorder %s22, 0
      %p152 = por %p150, %p151
      %p153 = scmp.ne.s32.totalorder %s145, %s147
      %p154 = scmp.eq.s32.totalorder %s27, 4
      %p155 = por %p153, %p154
      %p156 = scmp.ne.s32.totalorder %s147, %s148
      %p157 = scmp.eq.s32.totalorder %s27, 0
      %p158 = por %p156, %p157
      %p159 = scmp.ne.s32.totalorder %s147, %s148
      %p160 = scmp.eq.s32.totalorder %s28, 4
      %p161 = por %p159, %p160
      %p163 = scmp.ne.s32.totalorder %s148, %s162
      %p164 = scmp.eq.s32.totalorder %s28, 0
      %p165 = por %p163, %p164
      %s167 = sadd.s32 %s166, 1
      %p170 = scmp.eq.s32.totalorder %s22, 4
      %p171 = scmp.ne.s32.totalorder %s166, %s168
      %p172 = scmp.eq.s32.totalorder %s22, 0
      %p173 = por %p171, %p172
      %p174 = scmp.ne.s32.totalorder %s166, %s168
      %p175 = scmp.eq.s32.totalorder %s27, 4
      %p176 = por %p174, %p175
      %p177 = scmp.ne.s32.totalorder %s168, %s169
      %p178 = scmp.eq.s32.totalorder %s27, 0
      %p179 = por %p177, %p178
      %p180 = scmp.ne.s32.totalorder %s168, %s169
      %p181 = scmp.eq.s32.totalorder %s28, 4
      %p182 = por %p180, %p181
      %p184 = scmp.ne.s32.totalorder %s169, %s183
      %p185 = scmp.eq.s32.totalorder %s28, 0
      %p186 = por %p184, %p185
      %s188 = sadd.s32 %s187, 1
      %p191 = scmp.eq.s32.totalorder %s22, 4
      %p192 = scmp.ne.s32.totalorder %s187, %s189
      %p193 = scmp.eq.s32.totalorder %s22, 0
      %p194 = por %p192, %p193
      %p195 = scmp.ne.s32.totalorder %s187, %s189
      %p196 = scmp.eq.s32.totalorder %s27, 4
      %p197 = por %p195, %p196
      %p198 = scmp.ne.s32.totalorder %s189, %s190
      %p199 = scmp.eq.s32.totalorder %s27, 0
      %p200 = por %p198, %p199
      %p201 = scmp.ne.s32.totalorder %s189, %s190
      %p202 = scmp.eq.s32.totalorder %s28, 4
      %p203 = por %p201, %p202
      %p205 = scmp.ne.s32.totalorder %s190, %s204
      %p206 = scmp.eq.s32.totalorder %s28, 0
      %p207 = por %p205, %p206
      %p208 = scmp.le.s32.totalorder 1, %s22
      %p209 = scmp.lt.s32.totalorder %s22, 6
      %p210 = pnand %p208, %p209
      %p211 = pneg %p210
      // Predicated region
      $region9: #{tpu_custom_call.1} parent=5 // pred_check
        _
      $region10: #{tpu_custom_call.1} parent=5 // pred_check_branch
        %213 = sbr.rel (%p210) target = $region12
      $region11: #{tpu_custom_call.1} parent=5 // pred_region
        %s214 = ssub.s32 %s22, 1
        // Predicated region
        $region13: #{tpu_custom_call.1} parent=11 // pred_check
          %p215 = pneg %p95
        $region14: #{tpu_custom_call.1} parent=11 // pred_check_branch
          %217 = sbr.rel (%p215) target = $region16
        $region15: #{tpu_custom_call.1} parent=11 // pred_region
          %s219 = ssub.s32 64, 64
          %220 = vsyncadd [#allocation7], %s219
          %s222 = sshll.u32 [#allocation8], 4
          %s223 = int_to_ptr.vmem [resolvable:$true] %s222
          %225 = dma.hbm_to_vmem [thread:$0]  %s2, 64, %s223, [#allocation7]
        $region16: #{tpu_custom_call.1} parent=11 // pred_fallthru
          _
        // Predicated region
        $region17: #{tpu_custom_call.1} parent=11 // pred_check
          %p226 = pneg %p116
        $region18: #{tpu_custom_call.1} parent=11 // pred_check_branch
          %228 = sbr.rel (%p226) target = $region20
        $region19: #{tpu_custom_call.1} parent=11 // pred_region
          %s230 = ssub.s32 8192, 8192
          %231 = vsyncadd [#allocation10], %s230
          %s232 = sshll.u32 [#allocation9], 4
          %s233 = int_to_ptr.vmem [resolvable:$true] %s232
          %238 = dma.hbm_to_vmem [thread:$0]  %s3, 8192, %s233, [#allocation10], 128, 128, 8
        $region20: #{tpu_custom_call.1} parent=11 // pred_fallthru
          _
        // Predicated region
        $region21: #{tpu_custom_call.1} parent=11 // pred_check
          %p239 = pneg %p137
        $region22: #{tpu_custom_call.1} parent=11 // pred_check_branch
          %241 = sbr.rel (%p239) target = $region24
        $region23: #{tpu_custom_call.1} parent=11 // pred_region
          %s243 = ssub.s32 32, 32
          %244 = vsyncadd [#allocation10], %s243
          %s246 = sshll.u32 [#allocation11], 4
          %s247 = int_to_ptr.vmem [resolvable:$true] %s246
          %249 = dma.hbm_to_vmem [thread:$0]  %s4, 32, %s247, [#allocation10]
        $region24: #{tpu_custom_call.1} parent=11 // pred_fallthru
          _
        // Predicated region
        $region25: #{tpu_custom_call.1} parent=11 // pred_check
          %p250 = pneg %p158
        $region26: #{tpu_custom_call.1} parent=11 // pred_check_branch
          %252 = sbr.rel (%p250) target = $region28
        $region27: #{tpu_custom_call.1} parent=11 // pred_region
          _
        $region28: #{tpu_custom_call.1} parent=11 // pred_fallthru
          _
        // Predicated region
        $region29: #{tpu_custom_call.1} parent=11 // pred_check
          %p253 = pneg %p179
        $region30: #{tpu_custom_call.1} parent=11 // pred_check_branch
          %255 = sbr.rel (%p253) target = $region32
        $region31: #{tpu_custom_call.1} parent=11 // pred_region
          %s257 = ssub.s32 16, 16
          %258 = vsyncadd [#allocation13], %s257
          %s260 = sshll.u32 [#allocation12], 4
          %s261 = int_to_ptr.vmem [resolvable:$true] %s260
          %263 = dma.hbm_to_vmem [thread:$0]  %s6, 16, %s261, [#allocation13]
        $region32: #{tpu_custom_call.1} parent=11 // pred_fallthru
          _
      $region12: #{tpu_custom_call.1} parent=5 // pred_fallthru
        _
      %p264 = scmp.lt.s32.totalorder %s22, 5
      // Predicated region
      $region33: #{tpu_custom_call.1} parent=5 // pred_check
        %p265 = pneg %p264
      $region34: #{tpu_custom_call.1} parent=5 // pred_check_branch
        %267 = sbr.rel (%p265) target = $region36
      $region35: #{tpu_custom_call.1} parent=5 // pred_region
        // Predicated region
        $region37: #{tpu_custom_call.1} parent=35 // pred_check
          %p268 = pneg %p42
        $region38: #{tpu_custom_call.1} parent=35 // pred_check_branch
          %270 = sbr.rel (%p268) target = $region40
        $region39: #{tpu_custom_call.1} parent=35 // pred_region
          %s271 = sand.u32 %s32, 1
          %s272 = scalar_lea.sflag [#allocation4], %s271
          %s273 = sand.u32 %s32, 1
          %s274 = smul.addr %s273, 10
          %s275 = scalar_lea.vmem [#allocation3], %s274
          %s276 = smul.u32 5, %s22
          %s278 = ssub.s32 160, 160
          %279 = vsyncadd %s272, %s278
          %s280 = smul.addr %s276, 32
          %s281 = scalar_lea.hbm %s0, %s280
          %s283 = sshll.u32 %s275, 4
          %s284 = int_to_ptr.vmem [resolvable:$true] %s283
          %286 = dma.hbm_to_vmem [thread:$0]  %s281, 160, %s284, %s272
        $region40: #{tpu_custom_call.1} parent=35 // pred_fallthru
          _
        // Predicated region
        $region41: #{tpu_custom_call.1} parent=35 // pred_check
          %p287 = pneg %p68
        $region42: #{tpu_custom_call.1} parent=35 // pred_check_branch
          %289 = sbr.rel (%p287) target = $region44
        $region43: #{tpu_custom_call.1} parent=35 // pred_region
          %s290 = sand.u32 %s22, 1
          %s291 = scalar_lea.sflag [#allocation7], %s290
          %s292 = sand.u32 %s58, 1
          %s293 = smul.addr %s292, 1280
          %s294 = scalar_lea.vmem [#allocation6], %s293
          %s295 = smul.u32 80, %s22
          %s297 = ssub.s32 20480, 20480
          %298 = vsyncadd %s291, %s297
          %s299 = smul.addr %s295, 4
          %s300 = smul.addr %s299, 64
          %s301 = scalar_lea.hbm %s1, %s300
          %s302 = sshll.u32 %s294, 4
          %s303 = int_to_ptr.vmem [resolvable:$true] %s302
          %308 = dma.hbm_to_vmem [thread:$0]  %s301, 20480, %s303, %s291, 256, 256, 16
        $region44: #{tpu_custom_call.1} parent=35 // pred_fallthru
          _
      $region36: #{tpu_custom_call.1} parent=5 // pred_fallthru
        _
      %p309 = scmp.le.s32.totalorder 1, %s22
      %p310 = scmp.lt.s32.totalorder %s22, 6
      %p311 = pnand %p309, %p310
      %p312 = pneg %p311
      // Predicated region
      $region45: #{tpu_custom_call.1} parent=5 // pred_check
        _
      $region46: #{tpu_custom_call.1} parent=5 // pred_check_branch
        %314 = sbr.rel (%p311) target = $region48
      $region47: #{tpu_custom_call.1} parent=5 // pred_region
        %s315 = ssub.s32 %s22, 1
        %s316 = sand.u32 %s35, 1
        %s317 = scalar_lea.sflag [#allocation4], %s316
        %s318 = sand.u32 %s35, 1
        %s319 = smul.addr %s318, 10
        %s320 = scalar_lea.vmem [#allocation3], %s319
        // Predicated region
        $region49: #{tpu_custom_call.1} parent=47 // pred_check
          %p321 = pneg %p48
        $region50: #{tpu_custom_call.1} parent=47 // pred_check_branch
          %323 = sbr.rel (%p321) target = $region52
        $region51: #{tpu_custom_call.1} parent=47 // pred_region
          %324 = dma.done %s317, 160
        $region52: #{tpu_custom_call.1} parent=47 // pred_fallthru
          _
        %s325 = sand.u32 %s27, 1
        %s326 = scalar_lea.sflag [#allocation7], %s325
        %s327 = sand.u32 %s61, 1
        %s328 = smul.addr %s327, 1280
        %s329 = scalar_lea.vmem [#allocation6], %s328
        // Predicated region
        $region53: #{tpu_custom_call.1} parent=47 // pred_check
          %p330 = pneg %p74
        $region54: #{tpu_custom_call.1} parent=47 // pred_check_branch
          %332 = sbr.rel (%p330) target = $region56
        $region55: #{tpu_custom_call.1} parent=47 // pred_region
          %333 = dma.done %s326, 20480
        $region56: #{tpu_custom_call.1} parent=47 // pred_fallthru
          _
        // Predicated region
        $region57: #{tpu_custom_call.1} parent=47 // pred_check
          %p334 = pneg %p95
        $region58: #{tpu_custom_call.1} parent=47 // pred_check_branch
          %336 = sbr.rel (%p334) target = $region60
        $region59: #{tpu_custom_call.1} parent=47 // pred_region
          %337 = dma.done [#allocation7], 64
        $region60: #{tpu_custom_call.1} parent=47 // pred_fallthru
          _
        // Predicated region
        $region61: #{tpu_custom_call.1} parent=47 // pred_check
          %p338 = pneg %p116
        $region62: #{tpu_custom_call.1} parent=47 // pred_check_branch
          %340 = sbr.rel (%p338) target = $region64
        $region63: #{tpu_custom_call.1} parent=47 // pred_region
          %341 = dma.done [#allocation10], 8192
        $region64: #{tpu_custom_call.1} parent=47 // pred_fallthru
          _
        // Predicated region
        $region65: #{tpu_custom_call.1} parent=47 // pred_check
          %p342 = pneg %p137
        $region66: #{tpu_custom_call.1} parent=47 // pred_check_branch
          %344 = sbr.rel (%p342) target = $region68
        $region67: #{tpu_custom_call.1} parent=47 // pred_region
          %345 = dma.done [#allocation10], 32
        $region68: #{tpu_custom_call.1} parent=47 // pred_fallthru
          _
        // Predicated region
        $region69: #{tpu_custom_call.1} parent=47 // pred_check
          %p346 = pneg %p179
        $region70: #{tpu_custom_call.1} parent=47 // pred_check_branch
          %348 = sbr.rel (%p346) target = $region72
        $region71: #{tpu_custom_call.1} parent=47 // pred_region
          %349 = dma.done [#allocation13], 16
        $region72: #{tpu_custom_call.1} parent=47 // pred_fallthru
          _
        %s350 = sand.u32 %s35, 1
        %s351 = scalar_lea.sflag [#allocation4], %s350
        %s352 = sand.u32 %s35, 1
        %s353 = smul.addr %s352, 10
        %s354 = scalar_lea.vmem [#allocation3], %s353
        %p355 = pneg %p48
        %p356 = pneg %p45
        %s357 = sand.u32 %s27, 1
        %s358 = scalar_lea.sflag [#allocation7], %s357
        %s359 = sand.u32 %s61, 1
        %s360 = smul.addr %s359, 1280
        %s361 = scalar_lea.vmem [#allocation6], %s360
        %p362 = pneg %p74
        %p363 = pneg %p71
        %p364 = pneg %p95
        %p365 = pneg %p92
        %p366 = pneg %p116
        %p367 = pneg %p113
        %p368 = pneg %p137
        %p369 = pneg %p134
        %p370 = pneg %p158
        %p371 = pneg %p155
        %p372 = pneg %p179
        %p373 = pneg %p176
        %p374 = pneg %p200
        %p375 = pneg %p197
        %s376 = smul.u32 5, %s27
        %s377 = smul.u32 80, %s27
        %p379 = scmp.eq.s32.totalorder %s27, 0
        // Predicated region
        $region73: #{tpu_custom_call.1} parent=47 // pred_check
          %p380 = pneg %p379
        $region74: #{tpu_custom_call.1} parent=47 // pred_check_branch
          %382 = sbr.rel (%p380) target = $region76
        $region75: #{tpu_custom_call.1} parent=47 // pred_region
          %383 = vst [vmem:[#allocation2] sm:$0xff] 0.0
          %384 = vst [vmem:[#allocation2 + $0x8] sm:$0xff] 0.0
        $region76: #{tpu_custom_call.1} parent=47 // pred_fallthru
          _
        %v385 = vld [vmem:[#allocation2] sm:$0xff]
        %v386 = vld [vmem:[#allocation2 + $0x8] sm:$0xff]
        %v387 = vld [vmem:[%s320] sm:$0xff]
        %v388 = vld [vmem:[%s320 + $0x8] sm:$0x3]
        %v389 = vld [vmem:[%s329] sm:$0xff]
        %v390 = vld [vmem:[%s329 + $0x8] sm:$0xff]
        %v391 = vld [vmem:[%s329 + $0x10] sm:$0xff]
        %v392 = vld [vmem:[%s329 + $0x18] sm:$0xff]
        %v393 = vld [vmem:[%s329 + $0x20] sm:$0xff]
        %v394 = vld [vmem:[%s329 + $0x28] sm:$0xff]
        %v395 = vld [vmem:[%s329 + $0x30] sm:$0xff]
        %v396 = vld [vmem:[%s329 + $0x38] sm:$0xff]
        %v397 = vld [vmem:[%s329 + $0x40] sm:$0xff]
        %v398 = vld [vmem:[%s329 + $0x48] sm:$0xff]
        %v399 = vld [vmem:[%s329 + $0x50] sm:$0xff]
        %v400 = vld [vmem:[%s329 + $0x58] sm:$0xff]
        %v401 = vld [vmem:[%s329 + $0x60] sm:$0xff]
        %v402 = vld [vmem:[%s329 + $0x68] sm:$0xff]
        %v403 = vld [vmem:[%s329 + $0x70] sm:$0xff]
        %v404 = vld [vmem:[%s329 + $0x78] sm:$0xff]
        %v405 = vld [vmem:[%s329 + $0x80] sm:$0xff]
        %v406 = vld [vmem:[%s329 + $0x88] sm:$0xff]
        %v407 = vld [vmem:[%s329 + $0x90] sm:$0xff]
        %v408 = vld [vmem:[%s329 + $0x98] sm:$0xff]
        %v409 = vld [vmem:[%s329 + $0xa0] sm:$0xff]
        %v410 = vld [vmem:[%s329 + $0xa8] sm:$0xff]
        %v411 = vld [vmem:[%s329 + $0xb0] sm:$0xff]
        %v412 = vld [vmem:[%s329 + $0xb8] sm:$0xff]
        %v413 = vld [vmem:[%s329 + $0xc0] sm:$0xff]
        %v414 = vld [vmem:[%s329 + $0xc8] sm:$0xff]
        %v415 = vld [vmem:[%s329 + $0xd0] sm:$0xff]
        %v416 = vld [vmem:[%s329 + $0xd8] sm:$0xff]
        %v417 = vld [vmem:[%s329 + $0xe0] sm:$0xff]
        %v418 = vld [vmem:[%s329 + $0xe8] sm:$0xff]
        %v419 = vld [vmem:[%s329 + $0xf0] sm:$0xff]
        %v420 = vld [vmem:[%s329 + $0xf8] sm:$0xff]
        %v421 = vld [vmem:[%s329 + $0x100] sm:$0xff]
        %v422 = vld [vmem:[%s329 + $0x108] sm:$0xff]
        %v423 = vld [vmem:[%s329 + $0x110] sm:$0xff]
        %v424 = vld [vmem:[%s329 + $0x118] sm:$0xff]
        %v425 = vld [vmem:[%s329 + $0x120] sm:$0xff]
        %v426 = vld [vmem:[%s329 + $0x128] sm:$0xff]
        %v427 = vld [vmem:[%s329 + $0x130] sm:$0xff]
        %v428 = vld [vmem:[%s329 + $0x138] sm:$0xff]
        %v429 = vld [vmem:[%s329 + $0x140] sm:$0xff]
        %v430 = vld [vmem:[%s329 + $0x148] sm:$0xff]
        %v431 = vld [vmem:[%s329 + $0x150] sm:$0xff]
        %v432 = vld [vmem:[%s329 + $0x158] sm:$0xff]
        %v433 = vld [vmem:[%s329 + $0x160] sm:$0xff]
        %v434 = vld [vmem:[%s329 + $0x168] sm:$0xff]
        %v435 = vld [vmem:[%s329 + $0x170] sm:$0xff]
        %v436 = vld [vmem:[%s329 + $0x178] sm:$0xff]
        %v437 = vld [vmem:[%s329 + $0x180] sm:$0xff]
        %v438 = vld [vmem:[%s329 + $0x188] sm:$0xff]
        %v439 = vld [vmem:[%s329 + $0x190] sm:$0xff]
        %v440 = vld [vmem:[%s329 + $0x198] sm:$0xff]
        %v441 = vld [vmem:[%s329 + $0x1a0] sm:$0xff]
        %v442 = vld [vmem:[%s329 + $0x1a8] sm:$0xff]
        %v443 = vld [vmem:[%s329 + $0x1b0] sm:$0xff]
        %v444 = vld [vmem:[%s329 + $0x1b8] sm:$0xff]
        %v445 = vld [vmem:[%s329 + $0x1c0] sm:$0xff]
        %v446 = vld [vmem:[%s329 + $0x1c8] sm:$0xff]
        %v447 = vld [vmem:[%s329 + $0x1d0] sm:$0xff]
        %v448 = vld [vmem:[%s329 + $0x1d8] sm:$0xff]
        %v449 = vld [vmem:[%s329 + $0x1e0] sm:$0xff]
        %v450 = vld [vmem:[%s329 + $0x1e8] sm:$0xff]
        %v451 = vld [vmem:[%s329 + $0x1f0] sm:$0xff]
        %v452 = vld [vmem:[%s329 + $0x1f8] sm:$0xff]
        %v453 = vld [vmem:[%s329 + $0x200] sm:$0xff]
        %v454 = vld [vmem:[%s329 + $0x208] sm:$0xff]
        %v455 = vld [vmem:[%s329 + $0x210] sm:$0xff]
        %v456 = vld [vmem:[%s329 + $0x218] sm:$0xff]
        %v457 = vld [vmem:[%s329 + $0x220] sm:$0xff]
        %v458 = vld [vmem:[%s329 + $0x228] sm:$0xff]
        %v459 = vld [vmem:[%s329 + $0x230] sm:$0xff]
        %v460 = vld [vmem:[%s329 + $0x238] sm:$0xff]
        %v461 = vld [vmem:[%s329 + $0x240] sm:$0xff]
        %v462 = vld [vmem:[%s329 + $0x248] sm:$0xff]
        %v463 = vld [vmem:[%s329 + $0x250] sm:$0xff]
        %v464 = vld [vmem:[%s329 + $0x258] sm:$0xff]
        %v465 = vld [vmem:[%s329 + $0x260] sm:$0xff]
        %v466 = vld [vmem:[%s329 + $0x268] sm:$0xff]
        %v467 = vld [vmem:[%s329 + $0x270] sm:$0xff]
        %v468 = vld [vmem:[%s329 + $0x278] sm:$0xff]
        %v469 = vld [vmem:[%s329 + $0x280] sm:$0xff]
        %v470 = vld [vmem:[%s329 + $0x288] sm:$0xff]
        %v471 = vld [vmem:[%s329 + $0x290] sm:$0xff]
        %v472 = vld [vmem:[%s329 + $0x298] sm:$0xff]
        %v473 = vld [vmem:[%s329 + $0x2a0] sm:$0xff]
        %v474 = vld [vmem:[%s329 + $0x2a8] sm:$0xff]
        %v475 = vld [vmem:[%s329 + $0x2b0] sm:$0xff]
        %v476 = vld [vmem:[%s329 + $0x2b8] sm:$0xff]
        %v477 = vld [vmem:[%s329 + $0x2c0] sm:$0xff]
        %v478 = vld [vmem:[%s329 + $0x2c8] sm:$0xff]
        %v479 = vld [vmem:[%s329 + $0x2d0] sm:$0xff]
        %v480 = vld [vmem:[%s329 + $0x2d8] sm:$0xff]
        %v481 = vld [vmem:[%s329 + $0x2e0] sm:$0xff]
        %v482 = vld [vmem:[%s329 + $0x2e8] sm:$0xff]
        %v483 = vld [vmem:[%s329 + $0x2f0] sm:$0xff]
        %v484 = vld [vmem:[%s329 + $0x2f8] sm:$0xff]
        %v485 = vld [vmem:[%s329 + $0x300] sm:$0xff]
        %v486 = vld [vmem:[%s329 + $0x308] sm:$0xff]
        %v487 = vld [vmem:[%s329 + $0x310] sm:$0xff]
        %v488 = vld [vmem:[%s329 + $0x318] sm:$0xff]
        %v489 = vld [vmem:[%s329 + $0x320] sm:$0xff]
        %v490 = vld [vmem:[%s329 + $0x328] sm:$0xff]
        %v491 = vld [vmem:[%s329 + $0x330] sm:$0xff]
        %v492 = vld [vmem:[%s329 + $0x338] sm:$0xff]
        %v493 = vld [vmem:[%s329 + $0x340] sm:$0xff]
        %v494 = vld [vmem:[%s329 + $0x348] sm:$0xff]
        %v495 = vld [vmem:[%s329 + $0x350] sm:$0xff]
        %v496 = vld [vmem:[%s329 + $0x358] sm:$0xff]
        %v497 = vld [vmem:[%s329 + $0x360] sm:$0xff]
        %v498 = vld [vmem:[%s329 + $0x368] sm:$0xff]
        %v499 = vld [vmem:[%s329 + $0x370] sm:$0xff]
        %v500 = vld [vmem:[%s329 + $0x378] sm:$0xff]
        %v501 = vld [vmem:[%s329 + $0x380] sm:$0xff]
        %v502 = vld [vmem:[%s329 + $0x388] sm:$0xff]
        %v503 = vld [vmem:[%s329 + $0x390] sm:$0xff]
        %v504 = vld [vmem:[%s329 + $0x398] sm:$0xff]
        %v505 = vld [vmem:[%s329 + $0x3a0] sm:$0xff]
        %v506 = vld [vmem:[%s329 + $0x3a8] sm:$0xff]
        %v507 = vld [vmem:[%s329 + $0x3b0] sm:$0xff]
        %v508 = vld [vmem:[%s329 + $0x3b8] sm:$0xff]
        %v509 = vld [vmem:[%s329 + $0x3c0] sm:$0xff]
        %v510 = vld [vmem:[%s329 + $0x3c8] sm:$0xff]
        %v511 = vld [vmem:[%s329 + $0x3d0] sm:$0xff]
        %v512 = vld [vmem:[%s329 + $0x3d8] sm:$0xff]
        %v513 = vld [vmem:[%s329 + $0x3e0] sm:$0xff]
        %v514 = vld [vmem:[%s329 + $0x3e8] sm:$0xff]
        %v515 = vld [vmem:[%s329 + $0x3f0] sm:$0xff]
        %v516 = vld [vmem:[%s329 + $0x3f8] sm:$0xff]
        %v517 = vld [vmem:[%s329 + $0x400] sm:$0xff]
        %v518 = vld [vmem:[%s329 + $0x408] sm:$0xff]
        %v519 = vld [vmem:[%s329 + $0x410] sm:$0xff]
        %v520 = vld [vmem:[%s329 + $0x418] sm:$0xff]
        %v521 = vld [vmem:[%s329 + $0x420] sm:$0xff]
        %v522 = vld [vmem:[%s329 + $0x428] sm:$0xff]
        %v523 = vld [vmem:[%s329 + $0x430] sm:$0xff]
        %v524 = vld [vmem:[%s329 + $0x438] sm:$0xff]
        %v525 = vld [vmem:[%s329 + $0x440] sm:$0xff]
        %v526 = vld [vmem:[%s329 + $0x448] sm:$0xff]
        %v527 = vld [vmem:[%s329 + $0x450] sm:$0xff]
        %v528 = vld [vmem:[%s329 + $0x458] sm:$0xff]
        %v529 = vld [vmem:[%s329 + $0x460] sm:$0xff]
        %v530 = vld [vmem:[%s329 + $0x468] sm:$0xff]
        %v531 = vld [vmem:[%s329 + $0x470] sm:$0xff]
        %v532 = vld [vmem:[%s329 + $0x478] sm:$0xff]
        %v533 = vld [vmem:[%s329 + $0x480] sm:$0xff]
        %v534 = vld [vmem:[%s329 + $0x488] sm:$0xff]
        %v535 = vld [vmem:[%s329 + $0x490] sm:$0xff]
        %v536 = vld [vmem:[%s329 + $0x498] sm:$0xff]
        %v537 = vld [vmem:[%s329 + $0x4a0] sm:$0xff]
        %v538 = vld [vmem:[%s329 + $0x4a8] sm:$0xff]
        %v539 = vld [vmem:[%s329 + $0x4b0] sm:$0xff]
        %v540 = vld [vmem:[%s329 + $0x4b8] sm:$0xff]
        %v541 = vld [vmem:[%s329 + $0x4c0] sm:$0xff]
        %v542 = vld [vmem:[%s329 + $0x4c8] sm:$0xff]
        %v543 = vld [vmem:[%s329 + $0x4d0] sm:$0xff]
        %v544 = vld [vmem:[%s329 + $0x4d8] sm:$0xff]
        %v545 = vld [vmem:[%s329 + $0x4e0] sm:$0xff]
        %v546 = vld [vmem:[%s329 + $0x4e8] sm:$0xff]
        %v547 = vld [vmem:[%s329 + $0x4f0] sm:$0xff]
        %v548 = vld [vmem:[%s329 + $0x4f8] sm:$0xff]
        %v551 = vcombine.high %v387, %v387
        %v553 = vunpack.c.l.s4 1983009808
        %v554 = vunpack.c.0.s8 %v553
        %v555 = vlaneseq
        %v556 = vshrl.u32 %v555, 7
        %v557 = vsub.s32 %v554, %v556
        %v558 = vrot.slane %v387, %v557
        %v560 = vunpack.c.l.s4 1983009808
        %v561 = vunpack.c.0.s8 %v560
        %v562 = vlaneseq
        %v563 = vshrl.u32 %v562, 7
        %v564 = vsub.s32 %v561, %v563
        %v565 = vrot.slane %v551, %v564
        %v566 = vcombine.high %v558, %v558
        %v567 = vcombine.high %v565, %v565
        %v569 = vunpack.c.l.s4 1983009808
        %v570 = vunpack.c.0.s8 %v569
        %v571 = vlaneseq
        %v572 = vshrl.u32 %v571, 7
        %v573 = vsub.s32 %v570, %v572
        %v574 = vrot.slane %v388, %v573
        %v740 = vunpack.c.l.b16 %v389
        %v741 = vunpack.c.h.b16 %v389
        %v742 = vunpack.c.l.b16 %v390
        %v743 = vunpack.c.h.b16 %v390
        %v744 = vunpack.c.l.b16 %v391
        %v745 = vunpack.c.h.b16 %v391
        %v746 = vunpack.c.l.b16 %v392
        %v747 = vunpack.c.h.b16 %v392
        %v748 = vunpack.c.l.b16 %v393
        %v749 = vunpack.c.h.b16 %v393
        %v750 = vunpack.c.l.b16 %v394
        %v751 = vunpack.c.h.b16 %v394
        %v752 = vunpack.c.l.b16 %v395
        %v753 = vunpack.c.h.b16 %v395
        %v754 = vunpack.c.l.b16 %v396
        %v755 = vunpack.c.h.b16 %v396
        %v756 = vunpack.c.l.b16 %v397
        %v757 = vunpack.c.h.b16 %v397
        %v758 = vunpack.c.l.b16 %v398
        %v759 = vunpack.c.h.b16 %v398
        %v760 = vunpack.c.l.b16 %v399
        %v761 = vunpack.c.h.b16 %v399
        %v762 = vunpack.c.l.b16 %v400
        %v763 = vunpack.c.h.b16 %v400
        %v764 = vunpack.c.l.b16 %v401
        %v765 = vunpack.c.h.b16 %v401
        %v766 = vunpack.c.l.b16 %v402
        %v767 = vunpack.c.h.b16 %v402
        %v768 = vunpack.c.l.b16 %v403
        %v769 = vunpack.c.h.b16 %v403
        %v770 = vunpack.c.l.b16 %v404
        %v771 = vunpack.c.h.b16 %v404
        %v772 = vunpack.c.l.b16 %v405
        %v773 = vunpack.c.h.b16 %v405
        %v774 = vunpack.c.l.b16 %v406
        %v775 = vunpack.c.h.b16 %v406
        %v776 = vunpack.c.l.b16 %v407
        %v777 = vunpack.c.h.b16 %v407
        %v778 = vunpack.c.l.b16 %v408
        %v779 = vunpack.c.h.b16 %v408
        %v780 = vunpack.c.l.b16 %v409
        %v781 = vunpack.c.h.b16 %v409
        %v782 = vunpack.c.l.b16 %v410
        %v783 = vunpack.c.h.b16 %v410
        %v784 = vunpack.c.l.b16 %v411
        %v785 = vunpack.c.h.b16 %v411
        %v786 = vunpack.c.l.b16 %v412
        %v787 = vunpack.c.h.b16 %v412
        %v788 = vunpack.c.l.b16 %v413
        %v789 = vunpack.c.h.b16 %v413
        %v790 = vunpack.c.l.b16 %v414
        %v791 = vunpack.c.h.b16 %v414
        %v792 = vunpack.c.l.b16 %v415
        %v793 = vunpack.c.h.b16 %v415
        %v794 = vunpack.c.l.b16 %v416
        %v795 = vunpack.c.h.b16 %v416
        %v796 = vunpack.c.l.b16 %v417
        %v797 = vunpack.c.h.b16 %v417
        %v798 = vunpack.c.l.b16 %v418
        %v799 = vunpack.c.h.b16 %v418
        %v800 = vunpack.c.l.b16 %v419
        %v801 = vunpack.c.h.b16 %v419
        %v802 = vunpack.c.l.b16 %v420
        %v803 = vunpack.c.h.b16 %v420
        %v804 = vunpack.c.l.b16 %v421
        %v805 = vunpack.c.h.b16 %v421
        %v806 = vunpack.c.l.b16 %v422
        %v807 = vunpack.c.h.b16 %v422
        %v808 = vunpack.c.l.b16 %v423
        %v809 = vunpack.c.h.b16 %v423
        %v810 = vunpack.c.l.b16 %v424
        %v811 = vunpack.c.h.b16 %v424
        %v812 = vunpack.c.l.b16 %v425
        %v813 = vunpack.c.h.b16 %v425
        %v814 = vunpack.c.l.b16 %v426
        %v815 = vunpack.c.h.b16 %v426
        %v816 = vunpack.c.l.b16 %v427
        %v817 = vunpack.c.h.b16 %v427
        %v818 = vunpack.c.l.b16 %v428
        %v819 = vunpack.c.h.b16 %v428
        %v820 = vunpack.c.l.b16 %v429
        %v821 = vunpack.c.h.b16 %v429
        %v822 = vunpack.c.l.b16 %v430
        %v823 = vunpack.c.h.b16 %v430
        %v824 = vunpack.c.l.b16 %v431
        %v825 = vunpack.c.h.b16 %v431
        %v826 = vunpack.c.l.b16 %v432
        %v827 = vunpack.c.h.b16 %v432
        %v828 = vunpack.c.l.b16 %v433
        %v829 = vunpack.c.h.b16 %v433
        %v830 = vunpack.c.l.b16 %v434
        %v831 = vunpack.c.h.b16 %v434
        %v832 = vunpack.c.l.b16 %v435
        %v833 = vunpack.c.h.b16 %v435
        %v834 = vunpack.c.l.b16 %v436
        %v835 = vunpack.c.h.b16 %v436
        %v836 = vunpack.c.l.b16 %v437
        %v837 = vunpack.c.h.b16 %v437
        %v838 = vunpack.c.l.b16 %v438
        %v839 = vunpack.c.h.b16 %v438
        %v840 = vunpack.c.l.b16 %v439
        %v841 = vunpack.c.h.b16 %v439
        %v842 = vunpack.c.l.b16 %v440
        %v843 = vunpack.c.h.b16 %v440
        %v844 = vunpack.c.l.b16 %v441
        %v845 = vunpack.c.h.b16 %v441
        %v846 = vunpack.c.l.b16 %v442
        %v847 = vunpack.c.h.b16 %v442
        %v848 = vunpack.c.l.b16 %v443
        %v849 = vunpack.c.h.b16 %v443
        %v850 = vunpack.c.l.b16 %v444
        %v851 = vunpack.c.h.b16 %v444
        %v852 = vunpack.c.l.b16 %v445
        %v853 = vunpack.c.h.b16 %v445
        %v854 = vunpack.c.l.b16 %v446
        %v855 = vunpack.c.h.b16 %v446
        %v856 = vunpack.c.l.b16 %v447
        %v857 = vunpack.c.h.b16 %v447
        %v858 = vunpack.c.l.b16 %v448
        %v859 = vunpack.c.h.b16 %v448
        %v860 = vunpack.c.l.b16 %v449
        %v861 = vunpack.c.h.b16 %v449
        %v862 = vunpack.c.l.b16 %v450
        %v863 = vunpack.c.h.b16 %v450
        %v864 = vunpack.c.l.b16 %v451
        %v865 = vunpack.c.h.b16 %v451
        %v866 = vunpack.c.l.b16 %v452
        %v867 = vunpack.c.h.b16 %v452
        %v868 = vunpack.c.l.b16 %v453
        %v869 = vunpack.c.h.b16 %v453
        %v870 = vunpack.c.l.b16 %v454
        %v871 = vunpack.c.h.b16 %v454
        %v872 = vunpack.c.l.b16 %v455
        %v873 = vunpack.c.h.b16 %v455
        %v874 = vunpack.c.l.b16 %v456
        %v875 = vunpack.c.h.b16 %v456
        %v876 = vunpack.c.l.b16 %v457
        %v877 = vunpack.c.h.b16 %v457
        %v878 = vunpack.c.l.b16 %v458
        %v879 = vunpack.c.h.b16 %v458
        %v880 = vunpack.c.l.b16 %v459
        %v881 = vunpack.c.h.b16 %v459
        %v882 = vunpack.c.l.b16 %v460
        %v883 = vunpack.c.h.b16 %v460
        %v884 = vunpack.c.l.b16 %v461
        %v885 = vunpack.c.h.b16 %v461
        %v886 = vunpack.c.l.b16 %v462
        %v887 = vunpack.c.h.b16 %v462
        %v888 = vunpack.c.l.b16 %v463
        %v889 = vunpack.c.h.b16 %v463
        %v890 = vunpack.c.l.b16 %v464
        %v891 = vunpack.c.h.b16 %v464
        %v892 = vunpack.c.l.b16 %v465
        %v893 = vunpack.c.h.b16 %v465
        %v894 = vunpack.c.l.b16 %v466
        %v895 = vunpack.c.h.b16 %v466
        %v896 = vunpack.c.l.b16 %v467
        %v897 = vunpack.c.h.b16 %v467
        %v898 = vunpack.c.l.b16 %v468
        %v899 = vunpack.c.h.b16 %v468
        %v900 = vunpack.c.l.b16 %v469
        %v901 = vunpack.c.h.b16 %v469
        %v902 = vunpack.c.l.b16 %v470
        %v903 = vunpack.c.h.b16 %v470
        %v904 = vunpack.c.l.b16 %v471
        %v905 = vunpack.c.h.b16 %v471
        %v906 = vunpack.c.l.b16 %v472
        %v907 = vunpack.c.h.b16 %v472
        %v908 = vunpack.c.l.b16 %v473
        %v909 = vunpack.c.h.b16 %v473
        %v910 = vunpack.c.l.b16 %v474
        %v911 = vunpack.c.h.b16 %v474
        %v912 = vunpack.c.l.b16 %v475
        %v913 = vunpack.c.h.b16 %v475
        %v914 = vunpack.c.l.b16 %v476
        %v915 = vunpack.c.h.b16 %v476
        %v916 = vunpack.c.l.b16 %v477
        %v917 = vunpack.c.h.b16 %v477
        %v918 = vunpack.c.l.b16 %v478
        %v919 = vunpack.c.h.b16 %v478
        %v920 = vunpack.c.l.b16 %v479
        %v921 = vunpack.c.h.b16 %v479
        %v922 = vunpack.c.l.b16 %v480
        %v923 = vunpack.c.h.b16 %v480
        %v924 = vunpack.c.l.b16 %v481
        %v925 = vunpack.c.h.b16 %v481
        %v926 = vunpack.c.l.b16 %v482
        %v927 = vunpack.c.h.b16 %v482
        %v928 = vunpack.c.l.b16 %v483
        %v929 = vunpack.c.h.b16 %v483
        %v930 = vunpack.c.l.b16 %v484
        %v931 = vunpack.c.h.b16 %v484
        %v932 = vunpack.c.l.b16 %v485
        %v933 = vunpack.c.h.b16 %v485
        %v934 = vunpack.c.l.b16 %v486
        %v935 = vunpack.c.h.b16 %v486
        %v936 = vunpack.c.l.b16 %v487
        %v937 = vunpack.c.h.b16 %v487
        %v938 = vunpack.c.l.b16 %v488
        %v939 = vunpack.c.h.b16 %v488
        %v940 = vunpack.c.l.b16 %v489
        %v941 = vunpack.c.h.b16 %v489
        %v942 = vunpack.c.l.b16 %v490
        %v943 = vunpack.c.h.b16 %v490
        %v944 = vunpack.c.l.b16 %v491
        %v945 = vunpack.c.h.b16 %v491
        %v946 = vunpack.c.l.b16 %v492
        %v947 = vunpack.c.h.b16 %v492
        %v948 = vunpack.c.l.b16 %v493
        %v949 = vunpack.c.h.b16 %v493
        %v950 = vunpack.c.l.b16 %v494
        %v951 = vunpack.c.h.b16 %v494
        %v952 = vunpack.c.l.b16 %v495
        %v953 = vunpack.c.h.b16 %v495
        %v954 = vunpack.c.l.b16 %v496
        %v955 = vunpack.c.h.b16 %v496
        %v956 = vunpack.c.l.b16 %v497
        %v957 = vunpack.c.h.b16 %v497
        %v958 = vunpack.c.l.b16 %v498
        %v959 = vunpack.c.h.b16 %v498
        %v960 = vunpack.c.l.b16 %v499
        %v961 = vunpack.c.h.b16 %v499
        %v962 = vunpack.c.l.b16 %v500
        %v963 = vunpack.c.h.b16 %v500
        %v964 = vunpack.c.l.b16 %v501
        %v965 = vunpack.c.h.b16 %v501
        %v966 = vunpack.c.l.b16 %v502
        %v967 = vunpack.c.h.b16 %v502
        %v968 = vunpack.c.l.b16 %v503
        %v969 = vunpack.c.h.b16 %v503
        %v970 = vunpack.c.l.b16 %v504
        %v971 = vunpack.c.h.b16 %v504
        %v972 = vunpack.c.l.b16 %v505
        %v973 = vunpack.c.h.b16 %v505
        %v974 = vunpack.c.l.b16 %v506
        %v975 = vunpack.c.h.b16 %v506
        %v976 = vunpack.c.l.b16 %v507
        %v977 = vunpack.c.h.b16 %v507
        %v978 = vunpack.c.l.b16 %v508
        %v979 = vunpack.c.h.b16 %v508
        %v980 = vunpack.c.l.b16 %v509
        %v981 = vunpack.c.h.b16 %v509
        %v982 = vunpack.c.l.b16 %v510
        %v983 = vunpack.c.h.b16 %v510
        %v984 = vunpack.c.l.b16 %v511
        %v985 = vunpack.c.h.b16 %v511
        %v986 = vunpack.c.l.b16 %v512
        %v987 = vunpack.c.h.b16 %v512
        %v988 = vunpack.c.l.b16 %v513
        %v989 = vunpack.c.h.b16 %v513
        %v990 = vunpack.c.l.b16 %v514
        %v991 = vunpack.c.h.b16 %v514
        %v992 = vunpack.c.l.b16 %v515
        %v993 = vunpack.c.h.b16 %v515
        %v994 = vunpack.c.l.b16 %v516
        %v995 = vunpack.c.h.b16 %v516
        %v996 = vunpack.c.l.b16 %v517
        %v997 = vunpack.c.h.b16 %v517
        %v998 = vunpack.c.l.b16 %v518
        %v999 = vunpack.c.h.b16 %v518
        %v1000 = vunpack.c.l.b16 %v519
        %v1001 = vunpack.c.h.b16 %v519
        %v1002 = vunpack.c.l.b16 %v520
        %v1003 = vunpack.c.h.b16 %v520
        %v1004 = vunpack.c.l.b16 %v521
        %v1005 = vunpack.c.h.b16 %v521
        %v1006 = vunpack.c.l.b16 %v522
        %v1007 = vunpack.c.h.b16 %v522
        %v1008 = vunpack.c.l.b16 %v523
        %v1009 = vunpack.c.h.b16 %v523
        %v1010 = vunpack.c.l.b16 %v524
        %v1011 = vunpack.c.h.b16 %v524
        %v1012 = vunpack.c.l.b16 %v525
        %v1013 = vunpack.c.h.b16 %v525
        %v1014 = vunpack.c.l.b16 %v526
        %v1015 = vunpack.c.h.b16 %v526
        %v1016 = vunpack.c.l.b16 %v527
        %v1017 = vunpack.c.h.b16 %v527
        %v1018 = vunpack.c.l.b16 %v528
        %v1019 = vunpack.c.h.b16 %v528
        %v1020 = vunpack.c.l.b16 %v529
        %v1021 = vunpack.c.h.b16 %v529
        %v1022 = vunpack.c.l.b16 %v530
        %v1023 = vunpack.c.h.b16 %v530
        %v1024 = vunpack.c.l.b16 %v531
        %v1025 = vunpack.c.h.b16 %v531
        %v1026 = vunpack.c.l.b16 %v532
        %v1027 = vunpack.c.h.b16 %v532
        %v1028 = vunpack.c.l.b16 %v533
        %v1029 = vunpack.c.h.b16 %v533
        %v1030 = vunpack.c.l.b16 %v534
        %v1031 = vunpack.c.h.b16 %v534
        %v1032 = vunpack.c.l.b16 %v535
        %v1033 = vunpack.c.h.b16 %v535
        %v1034 = vunpack.c.l.b16 %v536
        %v1035 = vunpack.c.h.b16 %v536
        %v1036 = vunpack.c.l.b16 %v537
        %v1037 = vunpack.c.h.b16 %v537
        %v1038 = vunpack.c.l.b16 %v538
        %v1039 = vunpack.c.h.b16 %v538
        %v1040 = vunpack.c.l.b16 %v539
        %v1041 = vunpack.c.h.b16 %v539
        %v1042 = vunpack.c.l.b16 %v540
        %v1043 = vunpack.c.h.b16 %v540
        %v1044 = vunpack.c.l.b16 %v541
        %v1045 = vunpack.c.h.b16 %v541
        %v1046 = vunpack.c.l.b16 %v542
        %v1047 = vunpack.c.h.b16 %v542
        %v1048 = vunpack.c.l.b16 %v543
        %v1049 = vunpack.c.h.b16 %v543
        %v1050 = vunpack.c.l.b16 %v544
        %v1051 = vunpack.c.h.b16 %v544
        %v1052 = vunpack.c.l.b16 %v545
        %v1053 = vunpack.c.h.b16 %v545
        %v1054 = vunpack.c.l.b16 %v546
        %v1055 = vunpack.c.h.b16 %v546
        %v1056 = vunpack.c.l.b16 %v547
        %v1057 = vunpack.c.h.b16 %v547
        %v1058 = vunpack.c.l.b16 %v548
        %v1059 = vunpack.c.h.b16 %v548
        %v1060 = vpack.c.b16 %v744, %v740
        %v1061 = vpack.c.b16 %v745, %v741
        %v1062 = vpack.c.b16 %v746, %v742
        %v1063 = vpack.c.b16 %v747, %v743
        %v1064 = vpack.c.b16 %v752, %v748
        %v1065 = vpack.c.b16 %v753, %v749
        %v1066 = vpack.c.b16 %v754, %v750
        %v1067 = vpack.c.b16 %v755, %v751
        %v1068 = vpack.c.b16 %v760, %v756
        %v1069 = vpack.c.b16 %v761, %v757
        %v1070 = vpack.c.b16 %v762, %v758
        %v1071 = vpack.c.b16 %v763, %v759
        %v1072 = vpack.c.b16 %v768, %v764
        %v1073 = vpack.c.b16 %v769, %v765
        %v1074 = vpack.c.b16 %v770, %v766
        %v1075 = vpack.c.b16 %v771, %v767
        %v1076 = vpack.c.b16 %v776, %v772
        %v1077 = vpack.c.b16 %v777, %v773
        %v1078 = vpack.c.b16 %v778, %v774
        %v1079 = vpack.c.b16 %v779, %v775
        %v1080 = vpack.c.b16 %v784, %v780
        %v1081 = vpack.c.b16 %v785, %v781
        %v1082 = vpack.c.b16 %v786, %v782
        %v1083 = vpack.c.b16 %v787, %v783
        %v1084 = vpack.c.b16 %v792, %v788
        %v1085 = vpack.c.b16 %v793, %v789
        %v1086 = vpack.c.b16 %v794, %v790
        %v1087 = vpack.c.b16 %v795, %v791
        %v1088 = vpack.c.b16 %v800, %v796
        %v1089 = vpack.c.b16 %v801, %v797
        %v1090 = vpack.c.b16 %v802, %v798
        %v1091 = vpack.c.b16 %v803, %v799
        %v1092 = vpack.c.b16 %v808, %v804
        %v1093 = vpack.c.b16 %v809, %v805
        %v1094 = vpack.c.b16 %v810, %v806
        %v1095 = vpack.c.b16 %v811, %v807
        %v1096 = vpack.c.b16 %v816, %v812
        %v1097 = vpack.c.b16 %v817, %v813
        %v1098 = vpack.c.b16 %v818, %v814
        %v1099 = vpack.c.b16 %v819, %v815
        %v1100 = vpack.c.b16 %v824, %v820
        %v1101 = vpack.c.b16 %v825, %v821
        %v1102 = vpack.c.b16 %v826, %v822
        %v1103 = vpack.c.b16 %v827, %v823
        %v1104 = vpack.c.b16 %v832, %v828
        %v1105 = vpack.c.b16 %v833, %v829
        %v1106 = vpack.c.b16 %v834, %v830
        %v1107 = vpack.c.b16 %v835, %v831
        %v1108 = vpack.c.b16 %v840, %v836
        %v1109 = vpack.c.b16 %v841, %v837
        %v1110 = vpack.c.b16 %v842, %v838
        %v1111 = vpack.c.b16 %v843, %v839
        %v1112 = vpack.c.b16 %v848, %v844
        %v1113 = vpack.c.b16 %v849, %v845
        %v1114 = vpack.c.b16 %v850, %v846
        %v1115 = vpack.c.b16 %v851, %v847
        %v1116 = vpack.c.b16 %v856, %v852
        %v1117 = vpack.c.b16 %v857, %v853
        %v1118 = vpack.c.b16 %v858, %v854
        %v1119 = vpack.c.b16 %v859, %v855
        %v1120 = vpack.c.b16 %v864, %v860
        %v1121 = vpack.c.b16 %v865, %v861
        %v1122 = vpack.c.b16 %v866, %v862
        %v1123 = vpack.c.b16 %v867, %v863
        %v1124 = vpack.c.b16 %v872, %v868
        %v1125 = vpack.c.b16 %v873, %v869
        %v1126 = vpack.c.b16 %v874, %v870
        %v1127 = vpack.c.b16 %v875, %v871
        %v1128 = vpack.c.b16 %v880, %v876
        %v1129 = vpack.c.b16 %v881, %v877
        %v1130 = vpack.c.b16 %v882, %v878
        %v1131 = vpack.c.b16 %v883, %v879
        %v1132 = vpack.c.b16 %v888, %v884
        %v1133 = vpack.c.b16 %v889, %v885
        %v1134 = vpack.c.b16 %v890, %v886
        %v1135 = vpack.c.b16 %v891, %v887
        %v1136 = vpack.c.b16 %v896, %v892
        %v1137 = vpack.c.b16 %v897, %v893
        %v1138 = vpack.c.b16 %v898, %v894
        %v1139 = vpack.c.b16 %v899, %v895
        %v1140 = vpack.c.b16 %v904, %v900
        %v1141 = vpack.c.b16 %v905, %v901
        %v1142 = vpack.c.b16 %v906, %v902
        %v1143 = vpack.c.b16 %v907, %v903
        %v1144 = vpack.c.b16 %v912, %v908
        %v1145 = vpack.c.b16 %v913, %v909
        %v1146 = vpack.c.b16 %v914, %v910
        %v1147 = vpack.c.b16 %v915, %v911
        %v1148 = vpack.c.b16 %v920, %v916
        %v1149 = vpack.c.b16 %v921, %v917
        %v1150 = vpack.c.b16 %v922, %v918
        %v1151 = vpack.c.b16 %v923, %v919
        %v1152 = vpack.c.b16 %v928, %v924
        %v1153 = vpack.c.b16 %v929, %v925
        %v1154 = vpack.c.b16 %v930, %v926
        %v1155 = vpack.c.b16 %v931, %v927
        %v1156 = vpack.c.b16 %v936, %v932
        %v1157 = vpack.c.b16 %v937, %v933
        %v1158 = vpack.c.b16 %v938, %v934
        %v1159 = vpack.c.b16 %v939, %v935
        %v1160 = vpack.c.b16 %v944, %v940
        %v1161 = vpack.c.b16 %v945, %v941
        %v1162 = vpack.c.b16 %v946, %v942
        %v1163 = vpack.c.b16 %v947, %v943
        %v1164 = vpack.c.b16 %v952, %v948
        %v1165 = vpack.c.b16 %v953, %v949
        %v1166 = vpack.c.b16 %v954, %v950
        %v1167 = vpack.c.b16 %v955, %v951
        %v1168 = vpack.c.b16 %v960, %v956
        %v1169 = vpack.c.b16 %v961, %v957
        %v1170 = vpack.c.b16 %v962, %v958
        %v1171 = vpack.c.b16 %v963, %v959
        %v1172 = vpack.c.b16 %v968, %v964
        %v1173 = vpack.c.b16 %v969, %v965
        %v1174 = vpack.c.b16 %v970, %v966
        %v1175 = vpack.c.b16 %v971, %v967
        %v1176 = vpack.c.b16 %v976, %v972
        %v1177 = vpack.c.b16 %v977, %v973
        %v1178 = vpack.c.b16 %v978, %v974
        %v1179 = vpack.c.b16 %v979, %v975
        %v1180 = vpack.c.b16 %v984, %v980
        %v1181 = vpack.c.b16 %v985, %v981
        %v1182 = vpack.c.b16 %v986, %v982
        %v1183 = vpack.c.b16 %v987, %v983
        %v1184 = vpack.c.b16 %v992, %v988
        %v1185 = vpack.c.b16 %v993, %v989
        %v1186 = vpack.c.b16 %v994, %v990
        %v1187 = vpack.c.b16 %v995, %v991
        %v1188 = vpack.c.b16 %v1000, %v996
        %v1189 = vpack.c.b16 %v1001, %v997
        %v1190 = vpack.c.b16 %v1002, %v998
        %v1191 = vpack.c.b16 %v1003, %v999
        %v1192 = vpack.c.b16 %v1008, %v1004
        %v1193 = vpack.c.b16 %v1009, %v1005
        %v1194 = vpack.c.b16 %v1010, %v1006
        %v1195 = vpack.c.b16 %v1011, %v1007
        %v1196 = vpack.c.b16 %v1016, %v1012
        %v1197 = vpack.c.b16 %v1017, %v1013
        %v1198 = vpack.c.b16 %v1018, %v1014
        %v1199 = vpack.c.b16 %v1019, %v1015
        %v1200 = vpack.c.b16 %v1024, %v1020
        %v1201 = vpack.c.b16 %v1025, %v1021
        %v1202 = vpack.c.b16 %v1026, %v1022
        %v1203 = vpack.c.b16 %v1027, %v1023
        %v1204 = vpack.c.b16 %v1032, %v1028
        %v1205 = vpack.c.b16 %v1033, %v1029
        %v1206 = vpack.c.b16 %v1034, %v1030
        %v1207 = vpack.c.b16 %v1035, %v1031
        %v1208 = vpack.c.b16 %v1040, %v1036
        %v1209 = vpack.c.b16 %v1041, %v1037
        %v1210 = vpack.c.b16 %v1042, %v1038
        %v1211 = vpack.c.b16 %v1043, %v1039
        %v1212 = vpack.c.b16 %v1048, %v1044
        %v1213 = vpack.c.b16 %v1049, %v1045
        %v1214 = vpack.c.b16 %v1050, %v1046
        %v1215 = vpack.c.b16 %v1051, %v1047
        %v1216 = vpack.c.b16 %v1056, %v1052
        %v1217 = vpack.c.b16 %v1057, %v1053
        %v1218 = vpack.c.b16 %v1058, %v1054
        %v1219 = vpack.c.b16 %v1059, %v1055
        %1380 = vmatprep.subr.bf16.mxu0 %v1061
        %1381 = vmatpush1.bf16.msra.mxu0 %v1060
        %1382 = vmatprep.subr.bf16.mxu0 %v1065
        %1383 = vmatpush1.bf16.msra.mxu0 %v1064
        %1384 = vmatprep.subr.bf16.mxu0 %v1069
        %1385 = vmatpush1.bf16.msra.mxu0 %v1068
        %1386 = vmatprep.subr.bf16.mxu0 %v1073
        %1387 = vmatpush1.bf16.msra.mxu0 %v1072
        %1388 = vmatprep.subr.bf16.mxu0 %v1077
        %1389 = vmatpush1.bf16.msra.mxu0 %v1076
        %1390 = vmatprep.subr.bf16.mxu0 %v1081
        %1391 = vmatpush1.bf16.msra.mxu0 %v1080
        %1392 = vmatprep.subr.bf16.mxu0 %v1085
        %1393 = vmatpush1.bf16.msra.mxu0 %v1084
        %1394 = vmatprep.subr.bf16.mxu0 %v1089
        %1395 = vmatpush1.bf16.msra.mxu0 %v1088
        %1396 = vmatprep.subr.bf16.mxu0 %v1093
        %1397 = vmatpush1.bf16.msra.mxu0 %v1092
        %1398 = vmatprep.subr.bf16.mxu0 %v1097
        %1399 = vmatpush1.bf16.msra.mxu0 %v1096
        %1400 = vmatprep.subr.bf16.mxu0 %v1101
        %1401 = vmatpush1.bf16.msra.mxu0 %v1100
        %1402 = vmatprep.subr.bf16.mxu0 %v1105
        %1403 = vmatpush1.bf16.msra.mxu0 %v1104
        %1404 = vmatprep.subr.bf16.mxu0 %v1109
        %1405 = vmatpush1.bf16.msra.mxu0 %v1108
        %1406 = vmatprep.subr.bf16.mxu0 %v1113
        %1407 = vmatpush1.bf16.msra.mxu0 %v1112
        %1408 = vmatprep.subr.bf16.mxu0 %v1117
        %1409 = vmatpush1.bf16.msra.mxu0 %v1116
        %1410 = vmatprep.subr.bf16.mxu0 %v1121
        %1411 = vmatpush1.bf16.msra.mxu0 %v1120
        %1412 = vmatprep.mubr.bf16.mxu0 %v566
        %1413 = vmatmul.mubr.bf16.gmra.mrb[0].mxu0 %v558
        %v1414 = vpop.f32.mrb[0].mxu0
        %v1415 = vadd.f32 0.0, %v1414
        %v1416 = vpop.f32.mrb[0].mxu0
        %v1417 = vadd.f32 0.0, %v1416
        %v1418 = vpop.f32.mrb[0].mxu0
        %v1419 = vpop.f32.mrb[0].mxu0
        %1420 = vdwg.mxu0
        %1421 = vmatprep.subr.bf16.mxu0 %v1125
        %1422 = vmatpush1.bf16.msra.mxu0 %v1124
        %1423 = vmatprep.subr.bf16.mxu0 %v1129
        %1424 = vmatpush1.bf16.msra.mxu0 %v1128
        %1425 = vmatprep.subr.bf16.mxu0 %v1133
        %1426 = vmatpush1.bf16.msra.mxu0 %v1132
        %1427 = vmatprep.subr.bf16.mxu0 %v1137
        %1428 = vmatpush1.bf16.msra.mxu0 %v1136
        %1429 = vmatprep.subr.bf16.mxu0 %v1141
        %1430 = vmatpush1.bf16.msra.mxu0 %v1140
        %1431 = vmatprep.subr.bf16.mxu0 %v1145
        %1432 = vmatpush1.bf16.msra.mxu0 %v1144
        %1433 = vmatprep.subr.bf16.mxu0 %v1149
        %1434 = vmatpush1.bf16.msra.mxu0 %v1148
        %1435 = vmatprep.subr.bf16.mxu0 %v1153
        %1436 = vmatpush1.bf16.msra.mxu0 %v1152
        %1437 = vmatprep.subr.bf16.mxu0 %v1157
        %1438 = vmatpush1.bf16.msra.mxu0 %v1156
        %1439 = vmatprep.subr.bf16.mxu0 %v1161
        %1440 = vmatpush1.bf16.msra.mxu0 %v1160
        %1441 = vmatprep.subr.bf16.mxu0 %v1165
        %1442 = vmatpush1.bf16.msra.mxu0 %v1164
        %1443 = vmatprep.subr.bf16.mxu0 %v1169
        %1444 = vmatpush1.bf16.msra.mxu0 %v1168
        %1445 = vmatprep.subr.bf16.mxu0 %v1173
        %1446 = vmatpush1.bf16.msra.mxu0 %v1172
        %1447 = vmatprep.subr.bf16.mxu0 %v1177
        %1448 = vmatpush1.bf16.msra.mxu0 %v1176
        %1449 = vmatprep.subr.bf16.mxu0 %v1181
        %1450 = vmatpush1.bf16.msra.mxu0 %v1180
        %1451 = vmatprep.subr.bf16.mxu0 %v1185
        %1452 = vmatpush1.bf16.msra.mxu0 %v1184
        %1453 = vmatprep.mubr.bf16.mxu0 %v567
        %1454 = vmatmul.mubr.bf16.gmra.mrb[0].mxu0 %v565
        %v1455 = vpop.f32.mrb[0].mxu0
        %v1456 = vadd.f32 %v1415, %v1455
        %v1457 = vpop.f32.mrb[0].mxu0
        %v1458 = vadd.f32 %v1417, %v1457
        %v1459 = vpop.f32.mrb[0].mxu0
        %v1460 = vpop.f32.mrb[0].mxu0
        %1461 = vdwg.mxu0
        %1462 = vmatprep.subr.bf16.mxu0 %v1189
        %1463 = vmatpush1.bf16.msra.mxu0 %v1188
        %1464 = vmatprep.subr.bf16.mxu0 %v1193
        %1465 = vmatpush1.bf16.msra.mxu0 %v1192
        %1466 = vmatprep.subr.bf16.mxu0 %v1197
        %1467 = vmatpush1.bf16.msra.mxu0 %v1196
        %1468 = vmatprep.subr.bf16.mxu0 %v1201
        %1469 = vmatpush1.bf16.msra.mxu0 %v1200
        %1470 = vmatprep.subr.bf16.mxu0 %v1205
        %1471 = vmatpush1.bf16.msra.mxu0 %v1204
        %1472 = vmatprep.subr.bf16.mxu0 %v1209
        %1473 = vmatpush1.bf16.msra.mxu0 %v1208
        %1474 = vmatprep.subr.bf16.mxu0 %v1213
        %1475 = vmatpush1.bf16.msra.mxu0 %v1212
        %1476 = vmatprep.subr.bf16.mxu0 %v1217
        %1477 = vmatpush1.bf16.msra.mxu0 %v1216
        %1478 = vmatprep.subr.bf16.mxu0 0
        %1479 = vmatpush1.bf16.msra.mxu0 0
        %1480 = vmatprep.subr.bf16.mxu0 0
        %1481 = vmatpush1.bf16.msra.mxu0 0
        %1482 = vmatprep.subr.bf16.mxu0 0
        %1483 = vmatpush1.bf16.msra.mxu0 0
        %1484 = vmatprep.subr.bf16.mxu0 0
        %1485 = vmatpush1.bf16.msra.mxu0 0
        %1486 = vmatprep.subr.bf16.mxu0 0
        %1487 = vmatpush1.bf16.msra.mxu0 0
        %1488 = vmatprep.subr.bf16.mxu0 0
        %1489 = vmatpush1.bf16.msra.mxu0 0
        %1490 = vmatprep.subr.bf16.mxu0 0
        %1491 = vmatpush1.bf16.msra.mxu0 0
        %1492 = vmatprep.subr.bf16.mxu0 0
        %1493 = vmatpush1.bf16.msra.mxu0 0
        %1494 = vmatprep.mubr.bf16.mxu0 0
        %1495 = vmatmul.mubr.bf16.gmra.mrb[0].mxu0 %v574
        %v1496 = vpop.f32.mrb[0].mxu0
        %v1497 = vadd.f32 %v1456, %v1496
        %v1498 = vpop.f32.mrb[0].mxu0
        %v1499 = vadd.f32 %v1458, %v1498
        %v1500 = vpop.f32.mrb[0].mxu0
        %v1501 = vpop.f32.mrb[0].mxu0
        %1502 = vdwg.mxu0
        %1503 = vmatprep.subr.bf16.mxu0 %v1063
        %1504 = vmatpush1.bf16.msra.mxu0 %v1062
        %1505 = vmatprep.subr.bf16.mxu0 %v1067
        %1506 = vmatpush1.bf16.msra.mxu0 %v1066
        %1507 = vmatprep.subr.bf16.mxu0 %v1071
        %1508 = vmatpush1.bf16.msra.mxu0 %v1070
        %1509 = vmatprep.subr.bf16.mxu0 %v1075
        %1510 = vmatpush1.bf16.msra.mxu0 %v1074
        %1511 = vmatprep.subr.bf16.mxu0 %v1079
        %1512 = vmatpush1.bf16.msra.mxu0 %v1078
        %1513 = vmatprep.subr.bf16.mxu0 %v1083
        %1514 = vmatpush1.bf16.msra.mxu0 %v1082
        %1515 = vmatprep.subr.bf16.mxu0 %v1087
        %1516 = vmatpush1.bf16.msra.mxu0 %v1086
        %1517 = vmatprep.subr.bf16.mxu0 %v1091
        %1518 = vmatpush1.bf16.msra.mxu0 %v1090
        %1519 = vmatprep.subr.bf16.mxu0 %v1095
        %1520 = vmatpush1.bf16.msra.mxu0 %v1094
        %1521 = vmatprep.subr.bf16.mxu0 %v1099
        %1522 = vmatpush1.bf16.msra.mxu0 %v1098
        %1523 = vmatprep.subr.bf16.mxu0 %v1103
        %1524 = vmatpush1.bf16.msra.mxu0 %v1102
        %1525 = vmatprep.subr.bf16.mxu0 %v1107
        %1526 = vmatpush1.bf16.msra.mxu0 %v1106
        %1527 = vmatprep.subr.bf16.mxu0 %v1111
        %1528 = vmatpush1.bf16.msra.mxu0 %v1110
        %1529 = vmatprep.subr.bf16.mxu0 %v1115
        %1530 = vmatpush1.bf16.msra.mxu0 %v1114
        %1531 = vmatprep.subr.bf16.mxu0 %v1119
        %1532 = vmatpush1.bf16.msra.mxu0 %v1118
        %1533 = vmatprep.subr.bf16.mxu0 %v1123
        %1534 = vmatpush1.bf16.msra.mxu0 %v1122
        %1535 = vmatprep.mubr.bf16.mxu0 %v566
        %1536 = vmatmul.mubr.bf16.gmra.mrb[0].mxu0 %v558
        %v1537 = vpop.f32.mrb[0].mxu0
        %v1538 = vadd.f32 0.0, %v1537
        %v1539 = vpop.f32.mrb[0].mxu0
        %v1540 = vadd.f32 0.0, %v1539
        %v1541 = vpop.f32.mrb[0].mxu0
        %v1542 = vpop.f32.mrb[0].mxu0
        %1543 = vdwg.mxu0
        %1544 = vmatprep.subr.bf16.mxu0 %v1127
        %1545 = vmatpush1.bf16.msra.mxu0 %v1126
        %1546 = vmatprep.subr.bf16.mxu0 %v1131
        %1547 = vmatpush1.bf16.msra.mxu0 %v1130
        %1548 = vmatprep.subr.bf16.mxu0 %v1135
        %1549 = vmatpush1.bf16.msra.mxu0 %v1134
        %1550 = vmatprep.subr.bf16.mxu0 %v1139
        %1551 = vmatpush1.bf16.msra.mxu0 %v1138
        %1552 = vmatprep.subr.bf16.mxu0 %v1143
        %1553 = vmatpush1.bf16.msra.mxu0 %v1142
        %1554 = vmatprep.subr.bf16.mxu0 %v1147
        %1555 = vmatpush1.bf16.msra.mxu0 %v1146
        %1556 = vmatprep.subr.bf16.mxu0 %v1151
        %1557 = vmatpush1.bf16.msra.mxu0 %v1150
        %1558 = vmatprep.subr.bf16.mxu0 %v1155
        %1559 = vmatpush1.bf16.msra.mxu0 %v1154
        %1560 = vmatprep.subr.bf16.mxu0 %v1159
        %1561 = vmatpush1.bf16.msra.mxu0 %v1158
        %1562 = vmatprep.subr.bf16.mxu0 %v1163
        %1563 = vmatpush1.bf16.msra.mxu0 %v1162
        %1564 = vmatprep.subr.bf16.mxu0 %v1167
        %1565 = vmatpush1.bf16.msra.mxu0 %v1166
        %1566 = vmatprep.subr.bf16.mxu0 %v1171
        %1567 = vmatpush1.bf16.msra.mxu0 %v1170
        %1568 = vmatprep.subr.bf16.mxu0 %v1175
        %1569 = vmatpush1.bf16.msra.mxu0 %v1174
        %1570 = vmatprep.subr.bf16.mxu0 %v1179
        %1571 = vmatpush1.bf16.msra.mxu0 %v1178
        %1572 = vmatprep.subr.bf16.mxu0 %v1183
        %1573 = vmatpush1.bf16.msra.mxu0 %v1182
        %1574 = vmatprep.subr.bf16.mxu0 %v1187
        %1575 = vmatpush1.bf16.msra.mxu0 %v1186
        %1576 = vmatprep.mubr.bf16.mxu0 %v567
        %1577 = vmatmul.mubr.bf16.gmra.mrb[0].mxu0 %v565
        %v1578 = vpop.f32.mrb[0].mxu0
        %v1579 = vadd.f32 %v1538, %v1578
        %v1580 = vpop.f32.mrb[0].mxu0
        %v1581 = vadd.f32 %v1540, %v1580
        %v1582 = vpop.f32.mrb[0].mxu0
        %v1583 = vpop.f32.mrb[0].mxu0
        %1584 = vdwg.mxu0
        %1585 = vmatprep.subr.bf16.mxu0 %v1191
        %1586 = vmatpush1.bf16.msra.mxu0 %v1190
        %1587 = vmatprep.subr.bf16.mxu0 %v1195
        %1588 = vmatpush1.bf16.msra.mxu0 %v1194
        %1589 = vmatprep.subr.bf16.mxu0 %v1199
        %1590 = vmatpush1.bf16.msra.mxu0 %v1198
        %1591 = vmatprep.subr.bf16.mxu0 %v1203
        %1592 = vmatpush1.bf16.msra.mxu0 %v1202
        %1593 = vmatprep.subr.bf16.mxu0 %v1207
        %1594 = vmatpush1.bf16.msra.mxu0 %v1206
        %1595 = vmatprep.subr.bf16.mxu0 %v1211
        %1596 = vmatpush1.bf16.msra.mxu0 %v1210
        %1597 = vmatprep.subr.bf16.mxu0 %v1215
        %1598 = vmatpush1.bf16.msra.mxu0 %v1214
        %1599 = vmatprep.subr.bf16.mxu0 %v1219
        %1600 = vmatpush1.bf16.msra.mxu0 %v1218
        %1601 = vmatprep.subr.bf16.mxu0 0
        %1602 = vmatpush1.bf16.msra.mxu0 0
        %1603 = vmatprep.subr.bf16.mxu0 0
        %1604 = vmatpush1.bf16.msra.mxu0 0
        %1605 = vmatprep.subr.bf16.mxu0 0
        %1606 = vmatpush1.bf16.msra.mxu0 0
        %1607 = vmatprep.subr.bf16.mxu0 0
        %1608 = vmatpush1.bf16.msra.mxu0 0
        %1609 = vmatprep.subr.bf16.mxu0 0
        %1610 = vmatpush1.bf16.msra.mxu0 0
        %1611 = vmatprep.subr.bf16.mxu0 0
        %1612 = vmatpush1.bf16.msra.mxu0 0
        %1613 = vmatprep.subr.bf16.mxu0 0
        %1614 = vmatpush1.bf16.msra.mxu0 0
        %1615 = vmatprep.subr.bf16.mxu0 0
        %1616 = vmatpush1.bf16.msra.mxu0 0
        %1617 = vmatprep.mubr.bf16.mxu0 0
        %1618 = vmatmul.mubr.bf16.gmra.mrb[0].mxu0 %v574
        %v1619 = vpop.f32.mrb[0].mxu0
        %v1620 = vadd.f32 %v1579, %v1619
        %v1621 = vpop.f32.mrb[0].mxu0
        %v1622 = vadd.f32 %v1581, %v1621
        %v1623 = vpop.f32.mrb[0].mxu0
        %v1624 = vpop.f32.mrb[0].mxu0
        %1625 = vdwg.mxu0
        %v1630 = vcombine.low %v1497, %v1499
        %v1631 = vcombine.low %v1620, %v1622
        %v1634 = vadd.f32 %v385, %v1630
        %v1635 = vadd.f32 %v386, %v1631
        %1636 = vst [vmem:[#allocation2] sm:$0xff] %v1634
        %1637 = vst [vmem:[#allocation2 + $0x8] sm:$0xff] %v1635
        %p1638 = scmp.eq.s32.totalorder %s27, 4
        // Predicated region
        $region77: #{tpu_custom_call.1} parent=47 // pred_check
          %p1639 = pneg %p1638
        $region78: #{tpu_custom_call.1} parent=47 // pred_check_branch
          %1641 = sbr.rel (%p1639) target = $region80
        $region79: #{tpu_custom_call.1} parent=47 // pred_region
          %v1642 = vld [vmem:[#allocation2] sm:$0xff]
          %v1643 = vld [vmem:[#allocation2 + $0x8] sm:$0xff]
          %v1644 = vld [vmem:[#allocation8] sm:$0xf]
          %v1646 = vlaneseq
          %v1647 = vshrl.u32 %v1646, 7
          %v1648 = vsub.s32 0, %v1647
          %v1649 = vrot.slane %v1644, %v1648
          %v1650 = vlaneseq
          %v1651 = vshrl.u32 %v1650, 7
          %v1652 = vsub.s32 1, %v1651
          %v1653 = vrot.slane %v1644, %v1652
          %v1654 = vlaneseq
          %v1655 = vshrl.u32 %v1654, 7
          %v1656 = vsub.s32 2, %v1655
          %v1657 = vrot.slane %v1644, %v1656
          %v1658 = vlaneseq
          %v1659 = vshrl.u32 %v1658, 7
          %v1660 = vsub.s32 3, %v1659
          %v1661 = vrot.slane %v1644, %v1660
          %v1662 = vcombine.low %v1649, %v1653
          %v1663 = vcombine.low %v1657, %v1661
          %v1666 = vadd.f32 %v1642, %v1662
          %v1667 = vadd.f32 %v1643, %v1663
          %v1668 = vmax.f32 %v1666, 0.0
          %v1669 = vmax.f32 %v1667, 0.0
          %v1672 = vcombine.high %v1668, %v1668
          %v1673 = vcombine.high %v1669, %v1669
          %v1676 = vpack.c.bf16 %v1668, %v1668
          %v1677 = vpack.c.bf16 %v1672, %v1672
          %v1678 = vpack.c.bf16 %v1669, %v1669
          %v1679 = vpack.c.bf16 %v1673, %v1673
          %v1680 = vld [vmem:[#allocation9] sm:$0xff]
          %v1681 = vld [vmem:[#allocation9 + $0x8] sm:$0xff]
          %v1682 = vld [vmem:[#allocation9 + $0x10] sm:$0xff]
          %v1683 = vld [vmem:[#allocation9 + $0x18] sm:$0xff]
          %v1684 = vld [vmem:[#allocation9 + $0x20] sm:$0xff]
          %v1685 = vld [vmem:[#allocation9 + $0x28] sm:$0xff]
          %v1686 = vld [vmem:[#allocation9 + $0x30] sm:$0xff]
          %v1687 = vld [vmem:[#allocation9 + $0x38] sm:$0xff]
          %v1688 = vld [vmem:[#allocation9 + $0x40] sm:$0xff]
          %v1689 = vld [vmem:[#allocation9 + $0x48] sm:$0xff]
          %v1690 = vld [vmem:[#allocation9 + $0x50] sm:$0xff]
          %v1691 = vld [vmem:[#allocation9 + $0x58] sm:$0xff]
          %v1692 = vld [vmem:[#allocation9 + $0x60] sm:$0xff]
          %v1693 = vld [vmem:[#allocation9 + $0x68] sm:$0xff]
          %v1694 = vld [vmem:[#allocation9 + $0x70] sm:$0xff]
          %v1695 = vld [vmem:[#allocation9 + $0x78] sm:$0xff]
          %v1696 = vld [vmem:[#allocation9 + $0x80] sm:$0xff]
          %v1697 = vld [vmem:[#allocation9 + $0x88] sm:$0xff]
          %v1698 = vld [vmem:[#allocation9 + $0x90] sm:$0xff]
          %v1699 = vld [vmem:[#allocation9 + $0x98] sm:$0xff]
          %v1700 = vld [vmem:[#allocation9 + $0xa0] sm:$0xff]
          %v1701 = vld [vmem:[#allocation9 + $0xa8] sm:$0xff]
          %v1702 = vld [vmem:[#allocation9 + $0xb0] sm:$0xff]
          %v1703 = vld [vmem:[#allocation9 + $0xb8] sm:$0xff]
          %v1704 = vld [vmem:[#allocation9 + $0xc0] sm:$0xff]
          %v1705 = vld [vmem:[#allocation9 + $0xc8] sm:$0xff]
          %v1706 = vld [vmem:[#allocation9 + $0xd0] sm:$0xff]
          %v1707 = vld [vmem:[#allocation9 + $0xd8] sm:$0xff]
          %v1708 = vld [vmem:[#allocation9 + $0xe0] sm:$0xff]
          %v1709 = vld [vmem:[#allocation9 + $0xe8] sm:$0xff]
          %v1710 = vld [vmem:[#allocation9 + $0xf0] sm:$0xff]
          %v1711 = vld [vmem:[#allocation9 + $0xf8] sm:$0xff]
          %v1712 = vld [vmem:[#allocation9 + $0x100] sm:$0xff]
          %v1713 = vld [vmem:[#allocation9 + $0x108] sm:$0xff]
          %v1714 = vld [vmem:[#allocation9 + $0x110] sm:$0xff]
          %v1715 = vld [vmem:[#allocation9 + $0x118] sm:$0xff]
          %v1716 = vld [vmem:[#allocation9 + $0x120] sm:$0xff]
          %v1717 = vld [vmem:[#allocation9 + $0x128] sm:$0xff]
          %v1718 = vld [vmem:[#allocation9 + $0x130] sm:$0xff]
          %v1719 = vld [vmem:[#allocation9 + $0x138] sm:$0xff]
          %v1720 = vld [vmem:[#allocation9 + $0x140] sm:$0xff]
          %v1721 = vld [vmem:[#allocation9 + $0x148] sm:$0xff]
          %v1722 = vld [vmem:[#allocation9 + $0x150] sm:$0xff]
          %v1723 = vld [vmem:[#allocation9 + $0x158] sm:$0xff]
          %v1724 = vld [vmem:[#allocation9 + $0x160] sm:$0xff]
          %v1725 = vld [vmem:[#allocation9 + $0x168] sm:$0xff]
          %v1726 = vld [vmem:[#allocation9 + $0x170] sm:$0xff]
          %v1727 = vld [vmem:[#allocation9 + $0x178] sm:$0xff]
          %v1728 = vld [vmem:[#allocation9 + $0x180] sm:$0xff]
          %v1729 = vld [vmem:[#allocation9 + $0x188] sm:$0xff]
          %v1730 = vld [vmem:[#allocation9 + $0x190] sm:$0xff]
          %v1731 = vld [vmem:[#allocation9 + $0x198] sm:$0xff]
          %v1732 = vld [vmem:[#allocation9 + $0x1a0] sm:$0xff]
          %v1733 = vld [vmem:[#allocation9 + $0x1a8] sm:$0xff]
          %v1734 = vld [vmem:[#allocation9 + $0x1b0] sm:$0xff]
          %v1735 = vld [vmem:[#allocation9 + $0x1b8] sm:$0xff]
          %v1736 = vld [vmem:[#allocation9 + $0x1c0] sm:$0xff]
          %v1737 = vld [vmem:[#allocation9 + $0x1c8] sm:$0xff]
          %v1738 = vld [vmem:[#allocation9 + $0x1d0] sm:$0xff]
          %v1739 = vld [vmem:[#allocation9 + $0x1d8] sm:$0xff]
          %v1740 = vld [vmem:[#allocation9 + $0x1e0] sm:$0xff]
          %v1741 = vld [vmem:[#allocation9 + $0x1e8] sm:$0xff]
          %v1742 = vld [vmem:[#allocation9 + $0x1f0] sm:$0xff]
          %v1743 = vld [vmem:[#allocation9 + $0x1f8] sm:$0xff]
          %v1744 = vld [vmem:[#allocation11] sm:$0x3]
          %v1746 = vlaneseq
          %v1747 = vshrl.u32 %v1746, 7
          %v1748 = vsub.s32 0, %v1747
          %v1749 = vrot.slane %v1744, %v1748
          %v1750 = vlaneseq
          %v1751 = vshrl.u32 %v1750, 7
          %v1752 = vsub.s32 1, %v1751
          %v1753 = vrot.slane %v1744, %v1752
          %v1820 = vunpack.c.l.b16 %v1680
          %v1821 = vunpack.c.h.b16 %v1680
          %v1822 = vunpack.c.l.b16 %v1681
          %v1823 = vunpack.c.h.b16 %v1681
          %v1824 = vunpack.c.l.b16 %v1682
          %v1825 = vunpack.c.h.b16 %v1682
          %v1826 = vunpack.c.l.b16 %v1683
          %v1827 = vunpack.c.h.b16 %v1683
          %v1828 = vunpack.c.l.b16 %v1684
          %v1829 = vunpack.c.h.b16 %v1684
          %v1830 = vunpack.c.l.b16 %v1685
          %v1831 = vunpack.c.h.b16 %v1685
          %v1832 = vunpack.c.l.b16 %v1686
          %v1833 = vunpack.c.h.b16 %v1686
          %v1834 = vunpack.c.l.b16 %v1687
          %v1835 = vunpack.c.h.b16 %v1687
          %v1836 = vunpack.c.l.b16 %v1688
          %v1837 = vunpack.c.h.b16 %v1688
          %v1838 = vunpack.c.l.b16 %v1689
          %v1839 = vunpack.c.h.b16 %v1689
          %v1840 = vunpack.c.l.b16 %v1690
          %v1841 = vunpack.c.h.b16 %v1690
          %v1842 = vunpack.c.l.b16 %v1691
          %v1843 = vunpack.c.h.b16 %v1691
          %v1844 = vunpack.c.l.b16 %v1692
          %v1845 = vunpack.c.h.b16 %v1692
          %v1846 = vunpack.c.l.b16 %v1693
          %v1847 = vunpack.c.h.b16 %v1693
          %v1848 = vunpack.c.l.b16 %v1694
          %v1849 = vunpack.c.h.b16 %v1694
          %v1850 = vunpack.c.l.b16 %v1695
          %v1851 = vunpack.c.h.b16 %v1695
          %v1852 = vunpack.c.l.b16 %v1696
          %v1853 = vunpack.c.h.b16 %v1696
          %v1854 = vunpack.c.l.b16 %v1697
          %v1855 = vunpack.c.h.b16 %v1697
          %v1856 = vunpack.c.l.b16 %v1698
          %v1857 = vunpack.c.h.b16 %v1698
          %v1858 = vunpack.c.l.b16 %v1699
          %v1859 = vunpack.c.h.b16 %v1699
          %v1860 = vunpack.c.l.b16 %v1700
          %v1861 = vunpack.c.h.b16 %v1700
          %v1862 = vunpack.c.l.b16 %v1701
          %v1863 = vunpack.c.h.b16 %v1701
          %v1864 = vunpack.c.l.b16 %v1702
          %v1865 = vunpack.c.h.b16 %v1702
          %v1866 = vunpack.c.l.b16 %v1703
          %v1867 = vunpack.c.h.b16 %v1703
          %v1868 = vunpack.c.l.b16 %v1704
          %v1869 = vunpack.c.h.b16 %v1704
          %v1870 = vunpack.c.l.b16 %v1705
          %v1871 = vunpack.c.h.b16 %v1705
          %v1872 = vunpack.c.l.b16 %v1706
          %v1873 = vunpack.c.h.b16 %v1706
          %v1874 = vunpack.c.l.b16 %v1707
          %v1875 = vunpack.c.h.b16 %v1707
          %v1876 = vunpack.c.l.b16 %v1708
          %v1877 = vunpack.c.h.b16 %v1708
          %v1878 = vunpack.c.l.b16 %v1709
          %v1879 = vunpack.c.h.b16 %v1709
          %v1880 = vunpack.c.l.b16 %v1710
          %v1881 = vunpack.c.h.b16 %v1710
          %v1882 = vunpack.c.l.b16 %v1711
          %v1883 = vunpack.c.h.b16 %v1711
          %v1884 = vunpack.c.l.b16 %v1712
          %v1885 = vunpack.c.h.b16 %v1712
          %v1886 = vunpack.c.l.b16 %v1713
          %v1887 = vunpack.c.h.b16 %v1713
          %v1888 = vunpack.c.l.b16 %v1714
          %v1889 = vunpack.c.h.b16 %v1714
          %v1890 = vunpack.c.l.b16 %v1715
          %v1891 = vunpack.c.h.b16 %v1715
          %v1892 = vunpack.c.l.b16 %v1716
          %v1893 = vunpack.c.h.b16 %v1716
          %v1894 = vunpack.c.l.b16 %v1717
          %v1895 = vunpack.c.h.b16 %v1717
          %v1896 = vunpack.c.l.b16 %v1718
          %v1897 = vunpack.c.h.b16 %v1718
          %v1898 = vunpack.c.l.b16 %v1719
          %v1899 = vunpack.c.h.b16 %v1719
          %v1900 = vunpack.c.l.b16 %v1720
          %v1901 = vunpack.c.h.b16 %v1720
          %v1902 = vunpack.c.l.b16 %v1721
          %v1903 = vunpack.c.h.b16 %v1721
          %v1904 = vunpack.c.l.b16 %v1722
          %v1905 = vunpack.c.h.b16 %v1722
          %v1906 = vunpack.c.l.b16 %v1723
          %v1907 = vunpack.c.h.b16 %v1723
          %v1908 = vunpack.c.l.b16 %v1724
          %v1909 = vunpack.c.h.b16 %v1724
          %v1910 = vunpack.c.l.b16 %v1725
          %v1911 = vunpack.c.h.b16 %v1725
          %v1912 = vunpack.c.l.b16 %v1726
          %v1913 = vunpack.c.h.b16 %v1726
          %v1914 = vunpack.c.l.b16 %v1727
          %v1915 = vunpack.c.h.b16 %v1727
          %v1916 = vunpack.c.l.b16 %v1728
          %v1917 = vunpack.c.h.b16 %v1728
          %v1918 = vunpack.c.l.b16 %v1729
          %v1919 = vunpack.c.h.b16 %v1729
          %v1920 = vunpack.c.l.b16 %v1730
          %v1921 = vunpack.c.h.b16 %v1730
          %v1922 = vunpack.c.l.b16 %v1731
          %v1923 = vunpack.c.h.b16 %v1731
          %v1924 = vunpack.c.l.b16 %v1732
          %v1925 = vunpack.c.h.b16 %v1732
          %v1926 = vunpack.c.l.b16 %v1733
          %v1927 = vunpack.c.h.b16 %v1733
          %v1928 = vunpack.c.l.b16 %v1734
          %v1929 = vunpack.c.h.b16 %v1734
          %v1930 = vunpack.c.l.b16 %v1735
          %v1931 = vunpack.c.h.b16 %v1735
          %v1932 = vunpack.c.l.b16 %v1736
          %v1933 = vunpack.c.h.b16 %v1736
          %v1934 = vunpack.c.l.b16 %v1737
          %v1935 = vunpack.c.h.b16 %v1737
          %v1936 = vunpack.c.l.b16 %v1738
          %v1937 = vunpack.c.h.b16 %v1738
          %v1938 = vunpack.c.l.b16 %v1739
          %v1939 = vunpack.c.h.b16 %v1739
          %v1940 = vunpack.c.l.b16 %v1740
          %v1941 = vunpack.c.h.b16 %v1740
          %v1942 = vunpack.c.l.b16 %v1741
          %v1943 = vunpack.c.h.b16 %v1741
          %v1944 = vunpack.c.l.b16 %v1742
          %v1945 = vunpack.c.h.b16 %v1742
          %v1946 = vunpack.c.l.b16 %v1743
          %v1947 = vunpack.c.h.b16 %v1743
          %v1948 = vpack.c.b16 %v1822, %v1820
          %v1949 = vpack.c.b16 %v1823, %v1821
          %v1950 = vpack.c.b16 %v1826, %v1824
          %v1951 = vpack.c.b16 %v1827, %v1825
          %v1952 = vpack.c.b16 %v1830, %v1828
          %v1953 = vpack.c.b16 %v1831, %v1829
          %v1954 = vpack.c.b16 %v1834, %v1832
          %v1955 = vpack.c.b16 %v1835, %v1833
          %v1956 = vpack.c.b16 %v1838, %v1836
          %v1957 = vpack.c.b16 %v1839, %v1837
          %v1958 = vpack.c.b16 %v1842, %v1840
          %v1959 = vpack.c.b16 %v1843, %v1841
          %v1960 = vpack.c.b16 %v1846, %v1844
          %v1961 = vpack.c.b16 %v1847, %v1845
          %v1962 = vpack.c.b16 %v1850, %v1848
          %v1963 = vpack.c.b16 %v1851, %v1849
          %v1964 = vpack.c.b16 %v1854, %v1852
          %v1965 = vpack.c.b16 %v1855, %v1853
          %v1966 = vpack.c.b16 %v1858, %v1856
          %v1967 = vpack.c.b16 %v1859, %v1857
          %v1968 = vpack.c.b16 %v1862, %v1860
          %v1969 = vpack.c.b16 %v1863, %v1861
          %v1970 = vpack.c.b16 %v1866, %v1864
          %v1971 = vpack.c.b16 %v1867, %v1865
          %v1972 = vpack.c.b16 %v1870, %v1868
          %v1973 = vpack.c.b16 %v1871, %v1869
          %v1974 = vpack.c.b16 %v1874, %v1872
          %v1975 = vpack.c.b16 %v1875, %v1873
          %v1976 = vpack.c.b16 %v1878, %v1876
          %v1977 = vpack.c.b16 %v1879, %v1877
          %v1978 = vpack.c.b16 %v1882, %v1880
          %v1979 = vpack.c.b16 %v1883, %v1881
          %v1980 = vpack.c.b16 %v1886, %v1884
          %v1981 = vpack.c.b16 %v1887, %v1885
          %v1982 = vpack.c.b16 %v1890, %v1888
          %v1983 = vpack.c.b16 %v1891, %v1889
          %v1984 = vpack.c.b16 %v1894, %v1892
          %v1985 = vpack.c.b16 %v1895, %v1893
          %v1986 = vpack.c.b16 %v1898, %v1896
          %v1987 = vpack.c.b16 %v1899, %v1897
          %v1988 = vpack.c.b16 %v1902, %v1900
          %v1989 = vpack.c.b16 %v1903, %v1901
          %v1990 = vpack.c.b16 %v1906, %v1904
          %v1991 = vpack.c.b16 %v1907, %v1905
          %v1992 = vpack.c.b16 %v1910, %v1908
          %v1993 = vpack.c.b16 %v1911, %v1909
          %v1994 = vpack.c.b16 %v1914, %v1912
          %v1995 = vpack.c.b16 %v1915, %v1913
          %v1996 = vpack.c.b16 %v1918, %v1916
          %v1997 = vpack.c.b16 %v1919, %v1917
          %v1998 = vpack.c.b16 %v1922, %v1920
          %v1999 = vpack.c.b16 %v1923, %v1921
          %v2000 = vpack.c.b16 %v1926, %v1924
          %v2001 = vpack.c.b16 %v1927, %v1925
          %v2002 = vpack.c.b16 %v1930, %v1928
          %v2003 = vpack.c.b16 %v1931, %v1929
          %v2004 = vpack.c.b16 %v1934, %v1932
          %v2005 = vpack.c.b16 %v1935, %v1933
          %v2006 = vpack.c.b16 %v1938, %v1936
          %v2007 = vpack.c.b16 %v1939, %v1937
          %v2008 = vpack.c.b16 %v1942, %v1940
          %v2009 = vpack.c.b16 %v1943, %v1941
          %v2010 = vpack.c.b16 %v1946, %v1944
          %v2011 = vpack.c.b16 %v1947, %v1945
          %2076 = vmatprep.subr.bf16.mxu0 %v1949
          %2077 = vmatpush1.bf16.msra.mxu0 %v1948
          %2078 = vmatprep.subr.bf16.mxu0 %v1951
          %2079 = vmatpush1.bf16.msra.mxu0 %v1950
          %2080 = vmatprep.subr.bf16.mxu0 %v1953
          %2081 = vmatpush1.bf16.msra.mxu0 %v1952
          %2082 = vmatprep.subr.bf16.mxu0 %v1955
          %2083 = vmatpush1.bf16.msra.mxu0 %v1954
          %2084 = vmatprep.subr.bf16.mxu0 %v1957
          %2085 = vmatpush1.bf16.msra.mxu0 %v1956
          %2086 = vmatprep.subr.bf16.mxu0 %v1959
          %2087 = vmatpush1.bf16.msra.mxu0 %v1958
          %2088 = vmatprep.subr.bf16.mxu0 %v1961
          %2089 = vmatpush1.bf16.msra.mxu0 %v1960
          %2090 = vmatprep.subr.bf16.mxu0 %v1963
          %2091 = vmatpush1.bf16.msra.mxu0 %v1962
          %2092 = vmatprep.subr.bf16.mxu0 %v1965
          %2093 = vmatpush1.bf16.msra.mxu0 %v1964
          %2094 = vmatprep.subr.bf16.mxu0 %v1967
          %2095 = vmatpush1.bf16.msra.mxu0 %v1966
          %2096 = vmatprep.subr.bf16.mxu0 %v1969
          %2097 = vmatpush1.bf16.msra.mxu0 %v1968
          %2098 = vmatprep.subr.bf16.mxu0 %v1971
          %2099 = vmatpush1.bf16.msra.mxu0 %v1970
          %2100 = vmatprep.subr.bf16.mxu0 %v1973
          %2101 = vmatpush1.bf16.msra.mxu0 %v1972
          %2102 = vmatprep.subr.bf16.mxu0 %v1975
          %2103 = vmatpush1.bf16.msra.mxu0 %v1974
          %2104 = vmatprep.subr.bf16.mxu0 %v1977
          %2105 = vmatpush1.bf16.msra.mxu0 %v1976
          %2106 = vmatprep.subr.bf16.mxu0 %v1979
          %2107 = vmatpush1.bf16.msra.mxu0 %v1978
          %2108 = vmatprep.mubr.bf16.mxu0 %v1677
          %2109 = vmatmul.mubr.bf16.gmra.mrb[0].mxu0 %v1676
          %v2110 = vpop.f32.mrb[0].mxu0
          %v2111 = vadd.f32 %v1749, %v2110
          %v2112 = vpop.f32.mrb[0].mxu0
          %v2113 = vadd.f32 %v1753, %v2112
          %v2114 = vpop.f32.mrb[0].mxu0
          %v2115 = vpop.f32.mrb[0].mxu0
          %2116 = vdwg.mxu0
          %2117 = vmatprep.subr.bf16.mxu0 %v1981
          %2118 = vmatpush1.bf16.msra.mxu0 %v1980
          %2119 = vmatprep.subr.bf16.mxu0 %v1983
          %2120 = vmatpush1.bf16.msra.mxu0 %v1982
          %2121 = vmatprep.subr.bf16.mxu0 %v1985
          %2122 = vmatpush1.bf16.msra.mxu0 %v1984
          %2123 = vmatprep.subr.bf16.mxu0 %v1987
          %2124 = vmatpush1.bf16.msra.mxu0 %v1986
          %2125 = vmatprep.subr.bf16.mxu0 %v1989
          %2126 = vmatpush1.bf16.msra.mxu0 %v1988
          %2127 = vmatprep.subr.bf16.mxu0 %v1991
          %2128 = vmatpush1.bf16.msra.mxu0 %v1990
          %2129 = vmatprep.subr.bf16.mxu0 %v1993
          %2130 = vmatpush1.bf16.msra.mxu0 %v1992
          %2131 = vmatprep.subr.bf16.mxu0 %v1995
          %2132 = vmatpush1.bf16.msra.mxu0 %v1994
          %2133 = vmatprep.subr.bf16.mxu0 %v1997
          %2134 = vmatpush1.bf16.msra.mxu0 %v1996
          %2135 = vmatprep.subr.bf16.mxu0 %v1999
          %2136 = vmatpush1.bf16.msra.mxu0 %v1998
          %2137 = vmatprep.subr.bf16.mxu0 %v2001
          %2138 = vmatpush1.bf16.msra.mxu0 %v2000
          %2139 = vmatprep.subr.bf16.mxu0 %v2003
          %2140 = vmatpush1.bf16.msra.mxu0 %v2002
          %2141 = vmatprep.subr.bf16.mxu0 %v2005
          %2142 = vmatpush1.bf16.msra.mxu0 %v2004
          %2143 = vmatprep.subr.bf16.mxu0 %v2007
          %2144 = vmatpush1.bf16.msra.mxu0 %v2006
          %2145 = vmatprep.subr.bf16.mxu0 %v2009
          %2146 = vmatpush1.bf16.msra.mxu0 %v2008
          %2147 = vmatprep.subr.bf16.mxu0 %v2011
          %2148 = vmatpush1.bf16.msra.mxu0 %v2010
          %2149 = vmatprep.mubr.bf16.mxu0 %v1679
          %2150 = vmatmul.mubr.bf16.gmra.mrb[0].mxu0 %v1678
          %v2151 = vpop.f32.mrb[0].mxu0
          %v2152 = vadd.f32 %v2111, %v2151
          %v2153 = vpop.f32.mrb[0].mxu0
          %v2154 = vadd.f32 %v2113, %v2153
          %v2155 = vpop.f32.mrb[0].mxu0
          %v2156 = vpop.f32.mrb[0].mxu0
          %2157 = vdwg.mxu0
          %v2158 = vmax.f32 %v2152, 0.0
          %v2159 = vmax.f32 %v2154, 0.0
          %v2160 = vpack.c.bf16 %v2158, %v2158
          %v2161 = vpack.c.bf16 %v2159, %v2159
          %v2162 = vld [vmem:[%s5] sm:$0xf]
          %v2163 = vld [vmem:[%s5 + $0x4] sm:$0xf]
          %v2164 = vld [vmem:[%s5 + $0x8] sm:$0xf]
          %v2165 = vld [vmem:[%s5 + $0xc] sm:$0xf]
          %v2166 = vld [vmem:[%s5 + $0x10] sm:$0xf]
          %v2167 = vld [vmem:[%s5 + $0x14] sm:$0xf]
          %v2168 = vld [vmem:[%s5 + $0x18] sm:$0xf]
          %v2169 = vld [vmem:[%s5 + $0x1c] sm:$0xf]
          %v2170 = vld [vmem:[%s5 + $0x20] sm:$0xf]
          %v2171 = vld [vmem:[%s5 + $0x24] sm:$0xf]
          %v2172 = vld [vmem:[%s5 + $0x28] sm:$0xf]
          %v2173 = vld [vmem:[%s5 + $0x2c] sm:$0xf]
          %v2174 = vld [vmem:[%s5 + $0x30] sm:$0xf]
          %v2175 = vld [vmem:[%s5 + $0x34] sm:$0xf]
          %v2176 = vld [vmem:[%s5 + $0x38] sm:$0xf]
          %v2177 = vld [vmem:[%s5 + $0x3c] sm:$0xf]
          %v2178 = vld [vmem:[%s5 + $0x40] sm:$0xf]
          %v2179 = vld [vmem:[%s5 + $0x44] sm:$0xf]
          %v2180 = vld [vmem:[%s5 + $0x48] sm:$0xf]
          %v2181 = vld [vmem:[%s5 + $0x4c] sm:$0xf]
          %v2182 = vld [vmem:[%s5 + $0x50] sm:$0xf]
          %v2183 = vld [vmem:[%s5 + $0x54] sm:$0xf]
          %v2184 = vld [vmem:[%s5 + $0x58] sm:$0xf]
          %v2185 = vld [vmem:[%s5 + $0x5c] sm:$0xf]
          %v2186 = vld [vmem:[%s5 + $0x60] sm:$0xf]
          %v2187 = vld [vmem:[%s5 + $0x64] sm:$0xf]
          %v2188 = vld [vmem:[%s5 + $0x68] sm:$0xf]
          %v2189 = vld [vmem:[%s5 + $0x6c] sm:$0xf]
          %v2190 = vld [vmem:[%s5 + $0x70] sm:$0xf]
          %v2191 = vld [vmem:[%s5 + $0x74] sm:$0xf]
          %v2192 = vld [vmem:[%s5 + $0x78] sm:$0xf]
          %v2193 = vld [vmem:[%s5 + $0x7c] sm:$0xf]
          %v2194 = vld [vmem:[#allocation12] sm:$0x1]
          %v2196 = vlaneseq
          %v2197 = vshrl.u32 %v2196, 7
          %v2198 = vsub.s32 0, %v2197
          %v2199 = vrot.slane %v2194, %v2198
          %v2233 = vunpack.c.l.b16 %v2162
          %v2234 = vunpack.c.l.b16 %v2163
          %v2235 = vunpack.c.l.b16 %v2164
          %v2236 = vunpack.c.l.b16 %v2165
          %v2237 = vunpack.c.l.b16 %v2166
          %v2238 = vunpack.c.l.b16 %v2167
          %v2239 = vunpack.c.l.b16 %v2168
          %v2240 = vunpack.c.l.b16 %v2169
          %v2241 = vunpack.c.l.b16 %v2170
          %v2242 = vunpack.c.l.b16 %v2171
          %v2243 = vunpack.c.l.b16 %v2172
          %v2244 = vunpack.c.l.b16 %v2173
          %v2245 = vunpack.c.l.b16 %v2174
          %v2246 = vunpack.c.l.b16 %v2175
          %v2247 = vunpack.c.l.b16 %v2176
          %v2248 = vunpack.c.l.b16 %v2177
          %v2249 = vunpack.c.l.b16 %v2178
          %v2250 = vunpack.c.l.b16 %v2179
          %v2251 = vunpack.c.l.b16 %v2180
          %v2252 = vunpack.c.l.b16 %v2181
          %v2253 = vunpack.c.l.b16 %v2182
          %v2254 = vunpack.c.l.b16 %v2183
          %v2255 = vunpack.c.l.b16 %v2184
          %v2256 = vunpack.c.l.b16 %v2185
          %v2257 = vunpack.c.l.b16 %v2186
          %v2258 = vunpack.c.l.b16 %v2187
          %v2259 = vunpack.c.l.b16 %v2188
          %v2260 = vunpack.c.l.b16 %v2189
          %v2261 = vunpack.c.l.b16 %v2190
          %v2262 = vunpack.c.l.b16 %v2191
          %v2263 = vunpack.c.l.b16 %v2192
          %v2264 = vunpack.c.l.b16 %v2193
          %v2265 = vpack.c.b16 %v2234, %v2233
          %v2266 = vpack.c.b16 %v2236, %v2235
          %v2267 = vpack.c.b16 %v2238, %v2237
          %v2268 = vpack.c.b16 %v2240, %v2239
          %v2269 = vpack.c.b16 %v2242, %v2241
          %v2270 = vpack.c.b16 %v2244, %v2243
          %v2271 = vpack.c.b16 %v2246, %v2245
          %v2272 = vpack.c.b16 %v2248, %v2247
          %v2273 = vpack.c.b16 %v2250, %v2249
          %v2274 = vpack.c.b16 %v2252, %v2251
          %v2275 = vpack.c.b16 %v2254, %v2253
          %v2276 = vpack.c.b16 %v2256, %v2255
          %v2277 = vpack.c.b16 %v2258, %v2257
          %v2278 = vpack.c.b16 %v2260, %v2259
          %v2279 = vpack.c.b16 %v2262, %v2261
          %v2280 = vpack.c.b16 %v2264, %v2263
          %2297 = vmatprep.subr.bf16.mxu0 0
          %2298 = vmatpush1.bf16.msra.mxu0 %v2265
          %2299 = vmatprep.subr.bf16.mxu0 0
          %2300 = vmatpush1.bf16.msra.mxu0 %v2266
          %2301 = vmatprep.subr.bf16.mxu0 0
          %2302 = vmatpush1.bf16.msra.mxu0 %v2267
          %2303 = vmatprep.subr.bf16.mxu0 0
          %2304 = vmatpush1.bf16.msra.mxu0 %v2268
          %2305 = vmatprep.subr.bf16.mxu0 0
          %2306 = vmatpush1.bf16.msra.mxu0 %v2269
          %2307 = vmatprep.subr.bf16.mxu0 0
          %2308 = vmatpush1.bf16.msra.mxu0 %v2270
          %2309 = vmatprep.subr.bf16.mxu0 0
          %2310 = vmatpush1.bf16.msra.mxu0 %v2271
          %2311 = vmatprep.subr.bf16.mxu0 0
          %2312 = vmatpush1.bf16.msra.mxu0 %v2272
          %2313 = vmatprep.subr.bf16.mxu0 0
          %2314 = vmatpush1.bf16.msra.mxu0 %v2273
          %2315 = vmatprep.subr.bf16.mxu0 0
          %2316 = vmatpush1.bf16.msra.mxu0 %v2274
          %2317 = vmatprep.subr.bf16.mxu0 0
          %2318 = vmatpush1.bf16.msra.mxu0 %v2275
          %2319 = vmatprep.subr.bf16.mxu0 0
          %2320 = vmatpush1.bf16.msra.mxu0 %v2276
          %2321 = vmatprep.subr.bf16.mxu0 0
          %2322 = vmatpush1.bf16.msra.mxu0 %v2277
          %2323 = vmatprep.subr.bf16.mxu0 0
          %2324 = vmatpush1.bf16.msra.mxu0 %v2278
          %2325 = vmatprep.subr.bf16.mxu0 0
          %2326 = vmatpush1.bf16.msra.mxu0 %v2279
          %2327 = vmatprep.subr.bf16.mxu0 0
          %2328 = vmatpush1.bf16.msra.mxu0 %v2280
          %2329 = vmatprep.mubr.bf16.mxu0 %v2161
          %2330 = vmatmul.mubr.bf16.gmra.mrb[0].mxu0 %v2160
          %v2331 = vpop.f32.mrb[0].mxu0
          %v2332 = vadd.f32 %v2199, %v2331
          %v2333 = vpop.f32.mrb[0].mxu0
          %v2334 = vpop.f32.mrb[0].mxu0
          %v2335 = vpop.f32.mrb[0].mxu0
          %2336 = vdwg.mxu0
          %vm2337 = vcmask 60416
          %2338 = vst.msk [vmem:[#allocation14] sm:$0xf] %vm2337, %v2332
        $region80: #{tpu_custom_call.1} parent=47 // pred_fallthru
          _
        // Predicated region
        $region81: #{tpu_custom_call.1} parent=47 // pred_check
          %p2339 = pneg %p197
        $region82: #{tpu_custom_call.1} parent=47 // pred_check_branch
          %2341 = sbr.rel (%p2339) target = $region84
        $region83: #{tpu_custom_call.1} parent=47 // pred_region
          %s2343 = ssub.s32 64, 64
          %2344 = vsyncadd [#allocation5], %s2343
          %s2346 = sshll.u32 [#allocation14], 4
          %s2347 = int_to_ptr.vmem [resolvable:$true] %s2346
          %2349 = dma.vmem_to_hbm [thread:$0]  %s2347, 64, %s7, [#allocation5]
        $region84: #{tpu_custom_call.1} parent=47 // pred_fallthru
          _
        // Predicated region
        $region85: #{tpu_custom_call.1} parent=47 // pred_check
          %p2350 = pneg %p197
        $region86: #{tpu_custom_call.1} parent=47 // pred_check_branch
          %2352 = sbr.rel (%p2350) target = $region88
        $region87: #{tpu_custom_call.1} parent=47 // pred_region
          %2353 = dma.done [#allocation5], 64
        $region88: #{tpu_custom_call.1} parent=47 // pred_fallthru
          _
      $region48: #{tpu_custom_call.1} parent=5 // pred_fallthru
        _
      %p2354 = scmp.le.s32.totalorder 2, %s22
      // Predicated region
      $region89: #{tpu_custom_call.1} parent=5 // pred_check
        %p2355 = pneg %p2354
      $region90: #{tpu_custom_call.1} parent=5 // pred_check_branch
        %2357 = sbr.rel (%p2355) target = $region92
      $region91: #{tpu_custom_call.1} parent=5 // pred_region
        %s2358 = ssub.s32 %s22, 2
      $region92: #{tpu_custom_call.1} parent=5 // pred_fallthru
        _
    $region6: #{tpu_custom_call.1} parent=1 // loop_footer
      %s26 = sadd.s32 1, %s22
    $region7: #{tpu_custom_call.1} parent=1 // loop_footer_branch
      %21 = sbr.rel target = $region3
    $region8: #{tpu_custom_call.1} parent=1 // loop_exit
      _
    %2359 = vsyncpa [#allocation4], 1
    %s2360 = scalar_lea.sflag [#allocation4], 1
    %2361 = vsyncpa %s2360, 1
    %2362 = vsyncpa [#allocation7], 1
    %s2363 = scalar_lea.sflag [#allocation7], 1
    %2364 = vsyncpa %s2363, 1
    %2365 = vsyncpa [#allocation10], 1
    %2366 = vsyncpa [#allocation13], 1
    %2367 = vsyncpa [#allocation5], 1
    %s2368 = scalar_lea.sflag [#allocation5], 1
    %2369 = vsyncpa %s2368, 1

</llo_original>
